<compile_context>
chip_gen: v7x
topology: tpu7x:2x2x1
jax: 0.10.0
libtpu: 0.0.40
codegen_flags: <defaults>
</compile_context>

<pallas_src>
import jax
import jax.numpy as jnp
from jax.experimental import pallas as pl
from jax.experimental.pallas import tpu as pltpu

BN_EPS = 1e-5
VMEM_LIMIT_BYTES = 32 * 1024 * 1024


# ------------------------------ Pallas kernel ------------------------------

def _fused_upsample_bn_relu_conv1x1_kernel(xm_ref, xh_ref, scale_ref, bias_ref,
                                           w_ref, o_ref):
    # xm_ref:    (1, TIH, W+2, Cin)     main low-res rows (edge-padded width)
    # xh_ref:    (1, 2,   W+2, Cin)     2-row halo (next padded rows)
    # scale_ref: (1, 1, Cin)            folded BN scale
    # bias_ref:  (1, 1, Cin)            folded BN bias
    # w_ref:     (P*Cin, P*Cout)        conv weight (P=4 block-diag or P=1)
    # o_ref:     (TIH, 2, W, 2*Cout)    phase-packed output rows [2h, 2h+1]
    tih = xm_ref.shape[1]
    wp = xm_ref.shape[2]
    cin = xm_ref.shape[3]
    w_lo = wp - 2
    pack = w_ref.shape[0] // cin           # 4 = phase-packed MXU, 1 = fallback
    cout = w_ref.shape[1] // pack

    # Low-res window with 2-row halo; fold eval-mode BN here (commutes with the
    # convex bilinear stencil, and is 4x cheaper at low resolution).
    xin = (jnp.concatenate([xm_ref[0], xh_ref[0]], axis=0)
           * scale_ref[...] + bias_ref[...])                  # (TIH+2, W+2, Cin)

    # H-direction 2x bilinear: even / odd output-row phases (leading-dim slices
    # are free -- they do not cross the (8,128) tile).
    h_even = 0.25 * xin[0:tih] + 0.75 * xin[1:tih + 1]        # output rows 2h
    h_odd = 0.75 * xin[1:tih + 1] + 0.25 * xin[2:tih + 2]     # output rows 2h+1

    def _col_phases(rows):
        a0 = rows[:, 0:w_lo]
        a1 = rows[:, 1:w_lo + 1]
        a2 = rows[:, 2:w_lo + 2]
        return 0.25 * a0 + 0.75 * a1, 0.75 * a1 + 0.25 * a2   # cols 2w, 2w+1

    ee, eo = _col_phases(h_even)    # (2h,   2w) / (2h,   2w+1)
    oe, oo = _col_phases(h_odd)     # (2h+1, 2w) / (2h+1, 2w+1)
    wmat = w_ref[...]

    if pack == 4:
        # Lane-pack all four phases -> one dense ReLU + ONE MXU matmul against
        # diag(W,W,W,W).  Result lanes come out as [2h:(2w,2w+1) | 2h+1:(2w,2w+1)]
        # which is exactly the phase-packed output layout -> two full-width,
        # unmasked stores.
        lhs = jnp.maximum(jnp.concatenate([ee, eo, oe, oo], axis=-1), 0.0)
        out = jnp.dot(lhs.reshape(tih * w_lo, 4 * cin), wmat,
                      preferred_element_type=jnp.float32)
        out = out.reshape(tih, w_lo, 4 * cout).astype(o_ref.dtype)
        o_ref[:, 0, :, :] = out[:, :, 0:2 * cout]             # output row 2h
        o_ref[:, 1, :, :] = out[:, :, 2 * cout:]              # output row 2h+1
    else:
        # Large-channel fallback: four dense matmuls (FLOP-optimal once K,N
        # exceed one MXU tile); scheduler overlaps VPU phase prep with MXU.
        def _relu_mm(p):
            r = jnp.dot(jnp.maximum(p, 0.0).reshape(tih * w_lo, cin), wmat,
                        preferred_element_type=jnp.float32)
            return r.reshape(tih, w_lo, cout).astype(o_ref.dtype)

        o_ref[:, 0, :, 0:cout] = _relu_mm(ee)
        o_ref[:, 0, :, cout:] = _relu_mm(eo)
        o_ref[:, 1, :, 0:cout] = _relu_mm(oe)
        o_ref[:, 1, :, cout:] = _relu_mm(oo)


# ------------------------------ host wrappers -------------------------------

def _choose_row_tile(h, w, cin, cout, budget_bytes=8 << 20, max_rows=32):
    """Largest even divisor of h whose per-step working set fits the budget."""
    per_row = 4 * w * (12 * cin + 8 * cout)   # rough f32 estimate (tiles + temps)
    best = None
    for t in range(2, min(h, max_rows) + 1, 2):
        if h % t:
            continue
        if best is None or t * per_row <= budget_bytes:
            best = t
    assert best is not None, "H must be even"
    return best


def upsample_transition(x_nchw, scale, bias, weight):
    """UpsampleTransition.forward.

    x_nchw : (N, Cin, H, W) float32
    scale, bias : (Cin,) folded eval-mode BatchNorm2d affine
    weight : (Cout, Cin) Conv2d(kernel_size=1, bias=False) weight
    returns (N, Cout, 2H, 2W) float32
    """
    n, cin, h, w = x_nchw.shape
    cout = weight.shape[0]
    assert h % 2 == 0, "row-tiled halo assumes even H"  # TODO(synk): odd H

    x = jnp.transpose(x_nchw, (0, 2, 3, 1))                          # NHWC
    xp = jnp.pad(x, ((0, 0), (1, 1), (1, 1), (0, 0)), mode="edge")   # (N,H+2,W+2,Cin)
    w_mat = jnp.transpose(weight, (1, 0)).astype(jnp.float32)        # (Cin, Cout)

    # Phase-packed MXU path: keep K=4*Cin, N=4*Cout within one (v6e/v7x) MXU
    # tile -> 4x fewer LHS pushes there, >= neutral on v5e.
    pack = 4 if (4 * cin <= 256 and 4 * cout <= 256) else 1
    if pack == 4:
        w_pk = jnp.zeros((4 * cin, 4 * cout), jnp.float32)
        for i in range(4):
            w_pk = w_pk.at[i * cin:(i + 1) * cin,
                           i * cout:(i + 1) * cout].set(w_mat)
    else:
        w_pk = w_mat

    tih = _choose_row_tile(h, w, cin, cout)
    half = tih // 2
    n_tiles = h // tih

    out4 = pl.pallas_call(
        _fused_upsample_bn_relu_conv1x1_kernel,
        out_shape=jax.ShapeDtypeStruct((n * h, 2, w, 2 * cout), jnp.float32),
        grid_spec=pltpu.PrefetchScalarGridSpec(
            num_scalar_prefetch=0,
            grid=(n, n_tiles),
            in_specs=[
                # main low-res row block
                pl.BlockSpec((1, tih, w + 2, cin), lambda b, t: (b, t, 0, 0)),
                # 2-row halo from the same padded array
                pl.BlockSpec((1, 2, w + 2, cin),
                             lambda b, t: (b, (t + 1) * half, 0, 0)),
                pl.BlockSpec((1, 1, cin), lambda b, t: (0, 0, 0)),
                pl.BlockSpec((1, 1, cin), lambda b, t: (0, 0, 0)),
                pl.BlockSpec(w_pk.shape, lambda b, t: (0, 0)),
            ],
            out_specs=pl.BlockSpec((tih, 2, w, 2 * cout),
                                   lambda b, t: (b * n_tiles + t, 0, 0, 0)),
        ),
        compiler_params=pltpu.CompilerParams(
            dimension_semantics=("parallel", "parallel"),
            vmem_limit_bytes=VMEM_LIMIT_BYTES),
    )(xp, xp, scale.reshape(1, 1, cin), bias.reshape(1, 1, cin), w_pk)

    # Free row-major reinterpretation of the phase-packed layout.
    y = out4.reshape(n, 2 * h, 2 * w, cout)
    return jnp.transpose(y, (0, 3, 1, 2))                            # NCHW


# -------------------------- params & pure-JAX reference ---------------------

def init_upsample_transition_params(key, input_features, output_features):
    wkey, gkey, bkey, mkey, vkey = jax.random.split(key, 5)
    bound = (1.0 / input_features) ** 0.5
    weight = jax.random.uniform(wkey, (output_features, input_features),
                                jnp.float32, -bound, bound)
    gamma = 1.0 + 0.1 * jax.random.normal(gkey, (input_features,), jnp.float32)
    beta = 0.1 * jax.random.normal(bkey, (input_features,), jnp.float32)
    running_mean = 0.1 * jax.random.normal(mkey, (input_features,), jnp.float32)
    running_var = jax.random.uniform(vkey, (input_features,), jnp.float32, 0.5, 1.5)
    scale = gamma / jnp.sqrt(running_var + BN_EPS)
    bias = beta - running_mean * scale
    return dict(scale=scale, bias=bias, weight=weight)


def _interp_params(in_size):
    # PyTorch F.interpolate(scale_factor=2, mode='bilinear', align_corners=False)
    i = jnp.arange(in_size * 2, dtype=jnp.float32)
    src = jnp.maximum((i + 0.5) * 0.5 - 0.5, 0.0)
    i0 = jnp.floor(src).astype(jnp.int32)
    i1 = jnp.minimum(i0 + 1, in_size - 1)
    w1 = src - i0.astype(jnp.float32)
    return i0, i1, 1.0 - w1, w1


def upsample_transition_ref(x_nchw, scale, bias, weight):
    x = jnp.transpose(x_nchw, (0, 2, 3, 1))
    _, hh, ww, _ = x.shape
    h0, h1, wh0, wh1 = _interp_params(hh)
    x = x[:, h0] * wh0[None, :, None, None] + x[:, h1] * wh1[None, :, None, None]
    c0, c1, wc0, wc1 = _interp_params(ww)
    x = x[:, :, c0] * wc0[None, None, :, None] + x[:, :, c1] * wc1[None, None, :, None]
    x = jnp.maximum(x * scale + bias, 0.0)
    y = jnp.einsum("nhwc,oc->nhwo", x, weight)
    return jnp.transpose(y, (0, 3, 1, 2))


# ----------------------------------- main ------------------------------------

if __name__ == "__main__":
    key = jax.random.PRNGKey(0)
    pkey, xkey = jax.random.split(key)

    N, CIN, COUT, H, W = 2, 32, 64, 16, 16
    params = init_upsample_transition_params(pkey, CIN, COUT)
    x = jax.random.normal(xkey, (N, CIN, H, W), jnp.float32)

    fwd = jax.jit(upsample_transition)
    out = jax.block_until_ready(
        fwd(x, params["scale"], params["bias"], params["weight"]))

    assert out.shape == (N, COUT, 2 * H, 2 * W), out.shape
    assert out.dtype == jnp.float32

    ref = upsample_transition_ref(x, params["scale"], params["bias"],
                                  params["weight"])
    err = float(jnp.max(jnp.abs(out - ref)))
    assert err < 1e-3, f"max abs err {err}"

    print("KERNEL_OK")
</pallas_src>

<mosaic_0001>
module attributes {stable_mosaic.version = 11 : i64} {
  func.func @_fused_upsample_bn_relu_conv1x1_kernel(%arg0: i32, %arg1: i32, %arg2: memref<1x16x18x32xf32, #tpu.memory_space<vmem>>, %arg3: memref<1x2x18x32xf32, #tpu.memory_space<vmem>>, %arg4: memref<1x1x32xf32, #tpu.memory_space<vmem>>, %arg5: memref<1x1x32xf32, #tpu.memory_space<vmem>>, %arg6: memref<128x256xf32, #tpu.memory_space<vmem>>, %arg7: memref<16x2x16x128xf32, #tpu.memory_space<vmem>>) attributes {dimension_semantics = [#tpu.dimension_semantics<parallel>, #tpu.dimension_semantics<parallel>], iteration_bounds = array<i64: 2, 1>, scalar_prefetch = 0 : i64, scratch_operands = 0 : i64, tpu.core_type = #tpu.core_type<tc>, window_params = [{transform_indices = @transform_0, window_bounds = array<i64: 1, 16, 18, 32>}, {transform_indices = @transform_1, window_bounds = array<i64: 1, 2, 18, 32>}, {pipeline_mode = #tpu.pipeline_mode<synchronous>, transform_indices = @transform_2, window_bounds = array<i64: 1, 1, 32>}, {pipeline_mode = #tpu.pipeline_mode<synchronous>, transform_indices = @transform_3, window_bounds = array<i64: 1, 1, 32>}, {pipeline_mode = #tpu.pipeline_mode<synchronous>, transform_indices = @transform_4, window_bounds = array<i64: 128, 256>}, {transform_indices = @transform_5, window_bounds = array<i64: 16, 2, 16, 128>}]} {
    %c0 = arith.constant 0 : index
    %c0_0 = arith.constant 0 : index
    %c0_1 = arith.constant 0 : index
    %c0_2 = arith.constant 0 : index
    %0 = vector.load %arg2[%c0, %c0_0, %c0_1, %c0_2] : memref<1x16x18x32xf32, #tpu.memory_space<vmem>>, vector<1x16x18x32xf32>
    %1 = vector.shape_cast %0 : vector<1x16x18x32xf32> to vector<16x18x32xf32>
    %c0_3 = arith.constant 0 : index
    %c0_4 = arith.constant 0 : index
    %c0_5 = arith.constant 0 : index
    %c0_6 = arith.constant 0 : index
    %2 = vector.load %arg3[%c0_3, %c0_4, %c0_5, %c0_6] : memref<1x2x18x32xf32, #tpu.memory_space<vmem>>, vector<1x2x18x32xf32>
    %3 = vector.shape_cast %2 : vector<1x2x18x32xf32> to vector<2x18x32xf32>
    %4 = tpu.concatenate %1, %3 in 0 : vector<16x18x32xf32>, vector<2x18x32xf32> -> vector<18x18x32xf32>
    %c0_7 = arith.constant 0 : index
    %c0_8 = arith.constant 0 : index
    %c0_9 = arith.constant 0 : index
    %5 = vector.load %arg4[%c0_7, %c0_8, %c0_9] : memref<1x1x32xf32, #tpu.memory_space<vmem>>, vector<1x1x32xf32>
    %6 = vector.broadcast %5 : vector<1x1x32xf32> to vector<18x18x32xf32>
    %7 = arith.mulf %4, %6 : vector<18x18x32xf32>
    %c0_10 = arith.constant 0 : index
    %c0_11 = arith.constant 0 : index
    %c0_12 = arith.constant 0 : index
    %8 = vector.load %arg5[%c0_10, %c0_11, %c0_12] : memref<1x1x32xf32, #tpu.memory_space<vmem>>, vector<1x1x32xf32>
    %9 = vector.broadcast %8 : vector<1x1x32xf32> to vector<18x18x32xf32>
    %10 = arith.addf %7, %9 : vector<18x18x32xf32>
    %11 = vector.extract_strided_slice %10 {offsets = [0, 0, 0], sizes = [16, 18, 32], strides = [1, 1, 1]} : vector<18x18x32xf32> to vector<16x18x32xf32>
    %cst = arith.constant 2.500000e-01 : f32
    %12 = vector.broadcast %cst : f32 to vector<16x18x32xf32>
    %13 = arith.mulf %12, %11 : vector<16x18x32xf32>
    %14 = vector.extract_strided_slice %10 {offsets = [1, 0, 0], sizes = [16, 18, 32], strides = [1, 1, 1]} : vector<18x18x32xf32> to vector<16x18x32xf32>
    %cst_13 = arith.constant 7.500000e-01 : f32
    %15 = vector.broadcast %cst_13 : f32 to vector<16x18x32xf32>
    %16 = arith.mulf %15, %14 : vector<16x18x32xf32>
    %17 = arith.addf %13, %16 : vector<16x18x32xf32>
    %18 = vector.extract_strided_slice %10 {offsets = [1, 0, 0], sizes = [16, 18, 32], strides = [1, 1, 1]} : vector<18x18x32xf32> to vector<16x18x32xf32>
    %cst_14 = arith.constant 7.500000e-01 : f32
    %19 = vector.broadcast %cst_14 : f32 to vector<16x18x32xf32>
    %20 = arith.mulf %19, %18 : vector<16x18x32xf32>
    %21 = vector.extract_strided_slice %10 {offsets = [2, 0, 0], sizes = [16, 18, 32], strides = [1, 1, 1]} : vector<18x18x32xf32> to vector<16x18x32xf32>
    %cst_15 = arith.constant 2.500000e-01 : f32
    %22 = vector.broadcast %cst_15 : f32 to vector<16x18x32xf32>
    %23 = arith.mulf %22, %21 : vector<16x18x32xf32>
    %24 = arith.addf %20, %23 : vector<16x18x32xf32>
    %25 = vector.extract_strided_slice %17 {offsets = [0, 0, 0], sizes = [16, 16, 32], strides = [1, 1, 1]} : vector<16x18x32xf32> to vector<16x16x32xf32>
    %26 = vector.extract_strided_slice %17 {offsets = [0, 1, 0], sizes = [16, 16, 32], strides = [1, 1, 1]} : vector<16x18x32xf32> to vector<16x16x32xf32>
    %27 = vector.extract_strided_slice %17 {offsets = [0, 2, 0], sizes = [16, 16, 32], strides = [1, 1, 1]} : vector<16x18x32xf32> to vector<16x16x32xf32>
    %cst_16 = arith.constant 2.500000e-01 : f32
    %28 = vector.broadcast %cst_16 : f32 to vector<16x16x32xf32>
    %29 = arith.mulf %28, %25 : vector<16x16x32xf32>
    %cst_17 = arith.constant 7.500000e-01 : f32
    %30 = vector.broadcast %cst_17 : f32 to vector<16x16x32xf32>
    %31 = arith.mulf %30, %26 : vector<16x16x32xf32>
    %32 = arith.addf %29, %31 : vector<16x16x32xf32>
    %cst_18 = arith.constant 7.500000e-01 : f32
    %33 = vector.broadcast %cst_18 : f32 to vector<16x16x32xf32>
    %34 = arith.mulf %33, %26 : vector<16x16x32xf32>
    %cst_19 = arith.constant 2.500000e-01 : f32
    %35 = vector.broadcast %cst_19 : f32 to vector<16x16x32xf32>
    %36 = arith.mulf %35, %27 : vector<16x16x32xf32>
    %37 = arith.addf %34, %36 : vector<16x16x32xf32>
    %38 = vector.extract_strided_slice %24 {offsets = [0, 0, 0], sizes = [16, 16, 32], strides = [1, 1, 1]} : vector<16x18x32xf32> to vector<16x16x32xf32>
    %39 = vector.extract_strided_slice %24 {offsets = [0, 1, 0], sizes = [16, 16, 32], strides = [1, 1, 1]} : vector<16x18x32xf32> to vector<16x16x32xf32>
    %40 = vector.extract_strided_slice %24 {offsets = [0, 2, 0], sizes = [16, 16, 32], strides = [1, 1, 1]} : vector<16x18x32xf32> to vector<16x16x32xf32>
    %cst_20 = arith.constant 2.500000e-01 : f32
    %41 = vector.broadcast %cst_20 : f32 to vector<16x16x32xf32>
    %42 = arith.mulf %41, %38 : vector<16x16x32xf32>
    %cst_21 = arith.constant 7.500000e-01 : f32
    %43 = vector.broadcast %cst_21 : f32 to vector<16x16x32xf32>
    %44 = arith.mulf %43, %39 : vector<16x16x32xf32>
    %45 = arith.addf %42, %44 : vector<16x16x32xf32>
    %cst_22 = arith.constant 7.500000e-01 : f32
    %46 = vector.broadcast %cst_22 : f32 to vector<16x16x32xf32>
    %47 = arith.mulf %46, %39 : vector<16x16x32xf32>
    %cst_23 = arith.constant 2.500000e-01 : f32
    %48 = vector.broadcast %cst_23 : f32 to vector<16x16x32xf32>
    %49 = arith.mulf %48, %40 : vector<16x16x32xf32>
    %50 = arith.addf %47, %49 : vector<16x16x32xf32>
    %c0_24 = arith.constant 0 : index
    %c0_25 = arith.constant 0 : index
    %51 = vector.load %arg6[%c0_24, %c0_25] : memref<128x256xf32, #tpu.memory_space<vmem>>, vector<128x256xf32>
    %52 = tpu.concatenate %32, %37, %45, %50 in 2 : vector<16x16x32xf32>, vector<16x16x32xf32>, vector<16x16x32xf32>, vector<16x16x32xf32> -> vector<16x16x128xf32>
    %cst_26 = arith.constant 0.000000e+00 : f32
    %53 = vector.broadcast %cst_26 : f32 to vector<16x16x128xf32>
    %54 = arith.maximumf %52, %53 : vector<16x16x128xf32>
    %55 = vector.shape_cast %54 : vector<16x16x128xf32> to vector<256x128xf32>
    %cst_27 = arith.constant dense<0.000000e+00> : vector<256x256xf32>
    %56 = tpu.matmul %55, %51, %cst_27 {dimension_numbers = #tpu.dot_dimension_numbers<[1], [0], [0], [1], [0, 0, 1, 1], [], []>} : vector<256x128xf32>, vector<128x256xf32>, vector<256x256xf32> -> vector<256x256xf32>
    %57 = vector.shape_cast %56 : vector<256x256xf32> to vector<16x16x256xf32>
    %58 = vector.extract_strided_slice %57 {offsets = [0, 0, 0], sizes = [16, 16, 128], strides = [1, 1, 1]} : vector<16x16x256xf32> to vector<16x16x128xf32>
    %c0_28 = arith.constant 0 : index
    %c0_29 = arith.constant 0 : index
    %c0_30 = arith.constant 0 : index
    %c0_31 = arith.constant 0 : index
    %59 = vector.load %arg7[%c0_28, %c0_29, %c0_30, %c0_31] : memref<16x2x16x128xf32, #tpu.memory_space<vmem>>, vector<16x1x16x128xf32>
    %60 = vector.shape_cast %59 : vector<16x1x16x128xf32> to vector<16x16x128xf32>
    %61 = vector.shape_cast %58 : vector<16x16x128xf32> to vector<16x1x16x128xf32>
    tpu.vector_store %arg7[%c0_28, %c0_29, %c0_30, %c0_31], %61 {strides = array<i32>} : memref<16x2x16x128xf32, #tpu.memory_space<vmem>>, vector<16x1x16x128xf32>,
    %62 = vector.extract_strided_slice %57 {offsets = [0, 0, 128], sizes = [16, 16, 128], strides = [1, 1, 1]} : vector<16x16x256xf32> to vector<16x16x128xf32>
    %c0_32 = arith.constant 0 : index
    %c1 = arith.constant 1 : index
    %c0_33 = arith.constant 0 : index
    %c0_34 = arith.constant 0 : index
    %63 = vector.load %arg7[%c0_32, %c1, %c0_33, %c0_34] : memref<16x2x16x128xf32, #tpu.memory_space<vmem>>, vector<16x1x16x128xf32>
    %64 = vector.shape_cast %63 : vector<16x1x16x128xf32> to vector<16x16x128xf32>
    %65 = vector.shape_cast %62 : vector<16x16x128xf32> to vector<16x1x16x128xf32>
    tpu.vector_store %arg7[%c0_32, %c1, %c0_33, %c0_34], %65 {strides = array<i32>} : memref<16x2x16x128xf32, #tpu.memory_space<vmem>>, vector<16x1x16x128xf32>,
    return
  }
  func.func @transform_0(%arg0: i32, %arg1: i32) -> (i32, i32, i32, i32) {
    %c0_i32 = arith.constant 0 : i32
    %c0_i32_0 = arith.constant 0 : i32
    %c0_i32_1 = arith.constant 0 : i32
    return %arg0, %arg1, %c0_i32, %c0_i32_0 : i32, i32, i32, i32
  }
  func.func @transform_1(%arg0: i32, %arg1: i32) -> (i32, i32, i32, i32) {
    %c1_i32 = arith.constant 1 : i32
    %0 = arith.addi %arg1, %c1_i32 : i32
    %c8_i32 = arith.constant 8 : i32
    %1 = arith.muli %0, %c8_i32 : i32
    %c0_i32 = arith.constant 0 : i32
    %c0_i32_0 = arith.constant 0 : i32
    %c0_i32_1 = arith.constant 0 : i32
    return %arg0, %1, %c0_i32, %c0_i32_0 : i32, i32, i32, i32
  }
  func.func @transform_2(%arg0: i32, %arg1: i32) -> (i32, i32, i32) {
    %c0_i32 = arith.constant 0 : i32
    %c0_i32_0 = arith.constant 0 : i32
    %c0_i32_1 = arith.constant 0 : i32
    %c0_i32_2 = arith.constant 0 : i32
    return %c0_i32, %c0_i32_0, %c0_i32_1 : i32, i32, i32
  }
  func.func @transform_3(%arg0: i32, %arg1: i32) -> (i32, i32, i32) {
    %c0_i32 = arith.constant 0 : i32
    %c0_i32_0 = arith.constant 0 : i32
    %c0_i32_1 = arith.constant 0 : i32
    %c0_i32_2 = arith.constant 0 : i32
    return %c0_i32, %c0_i32_0, %c0_i32_1 : i32, i32, i32
  }
  func.func @transform_4(%arg0: i32, %arg1: i32) -> (i32, i32) {
    %c0_i32 = arith.constant 0 : i32
    %c0_i32_0 = arith.constant 0 : i32
    %c0_i32_1 = arith.constant 0 : i32
    return %c0_i32, %c0_i32_0 : i32, i32
  }
  func.func @transform_5(%arg0: i32, %arg1: i32) -> (i32, i32, i32, i32) {
    %c1_i32 = arith.constant 1 : i32
    %0 = arith.muli %arg0, %c1_i32 : i32
    %1 = arith.addi %0, %arg1 : i32
    %c0_i32 = arith.constant 0 : i32
    %c0_i32_0 = arith.constant 0 : i32
    %c0_i32_1 = arith.constant 0 : i32
    %c0_i32_2 = arith.constant 0 : i32
    return %1, %c0_i32, %c0_i32_0, %c0_i32_1 : i32, i32, i32, i32
  }
}

</mosaic_0001>

<llo_original>
// kernel: upsample_transition.1
$region0: #{upsample_transition.1}
  #allocation0 [shape = 'u32[]', space=smem, size = 0x4, offset = 0x4, fixed_abs, tag = 'smem constant byte address 0x4 - core index']
  #allocation1 [shape = 'u32[144,128]{1,0:T(1,128)}', space=vmem, size = 0x12000, scoped, tag = 'internal scratch']
  %s0 = inlined_call_operand.vmem [shape: f32[2,18,18,32], index: 0, kind: input, shape index: {}, may-alias: {0,1}]
  %s1 = inlined_call_operand.vmem [shape: f32[2,18,18,32], index: 1, kind: input, shape index: {}, may-alias: {0,1}]
  %s2 = inlined_call_operand.vmem [shape: f32[1,1,32], index: 2, kind: input, shape index: {}]
  %s3 = inlined_call_operand.vmem [shape: f32[1,1,32], index: 3, kind: input, shape index: {}]
  %s4 = inlined_call_operand.vmem [shape: f32[128,256], index: 4, kind: input, shape index: {}]
  %s5 = inlined_call_operand.vmem [shape: f32[32,2,16,128], index: 5, kind: output, shape index: {}]
  %s6 = sld [smem:[#allocation0]]
  $region53: #{upsample_transition.1} parent=0
    _
  %s8 = ssub.s32 1, %s6
  %s9 = scalar_select 0, %s8, %s6
  loop: start=0, step=1, limit=4
  $region2: #{upsample_transition.1} parent=0 // loop_pre_header
    _
  $region3: #{upsample_transition.1} parent=0 // loop_header
    %s11 = sphi 0, %s15
    %p12 = scmp.ge.s32.totalorder %s11, 4
    %s18 = sphi 0, %s30
    %s19 = sphi 0, %s26
    %s20 = sphi 0, %s18
    %s21 = sphi 0, %s19
    %s22 = sphi 0, %s20
    %s23 = sphi 0, %s21
    %s35 = sphi 0, %s37
    %s38 = sphi 0, %s35
    %s39 = sphi 0, %s38
    %s55 = sphi 0, %s39
    %s67 = sphi 0, %s69
    %s70 = sphi 0, %s67
    %s71 = sphi 0, %s70
    %s87 = sphi 0, %s71
    %s91 = sphi 0, %s91
    %s93 = sphi 0, %s91
    %s94 = sphi 0, %s93
    %s108 = sphi 0, %s94
    %s112 = sphi 0, %s112
    %s114 = sphi 0, %s112
    %s115 = sphi 0, %s114
    %s129 = sphi 0, %s115
    %s133 = sphi 0, %s133
    %s135 = sphi 0, %s133
    %s136 = sphi 0, %s135
    %s150 = sphi 0, %s136
    %s158 = sphi 0, %s160
    %s161 = sphi 0, %s158
    %s162 = sphi 0, %s161
    %s178 = sphi 0, %s162
  $region4: #{upsample_transition.1} parent=0 // loop_header_branch
    %14 = sbr.rel (%p12) target = $region8
  $region5: #{upsample_transition.1} parent=0 // loop_body
    %s16 = ssub.s32 %s11, 1
    %s17 = ssub.s32 %s11, 2
    %s24 = sadd.s32 1, %s19
    %p25 = scmp.ge.s32.totalorder %s24, 1
    %s26 = scalar_select %p25, 0, %s24
    %s27 = sadd.s32 1, %s18
    %s28 = scalar_select %p25, %s27, %s18
    %p29 = scmp.ge.s32.totalorder %s28, 2
    %s30 = scalar_select %p29, 0, %s28
    %s31 = ssub.s32 %s18, %s30
    %s32 = ssub.s32 %s19, %s26
    %s33 = sor.u32 %s31, %s32
    %p34 = scmp.eq.s32.totalorder %s33, 0
    %s36 = sadd.s32 %s35, 1
    %s37 = scalar_select %p34, %s35, %s36
    %p40 = pneg %p34
    %p41 = scmp.eq.s32.totalorder %s11, 1
    %p42 = por %p40, %p41
    %p43 = scmp.ne.s32.totalorder %s35, %s38
    %p44 = scmp.eq.s32.totalorder %s11, 0
    %p45 = por %p43, %p44
    %p46 = scmp.ne.s32.totalorder %s35, %s38
    %p47 = scmp.eq.s32.totalorder %s16, 1
    %p48 = por %p46, %p47
    %p49 = scmp.ne.s32.totalorder %s38, %s39
    %p50 = scmp.eq.s32.totalorder %s16, 0
    %p51 = por %p49, %p50
    %p52 = scmp.ne.s32.totalorder %s38, %s39
    %p53 = scmp.eq.s32.totalorder %s17, 1
    %p54 = por %p52, %p53
    %p56 = scmp.ne.s32.totalorder %s39, %s55
    %p57 = scmp.eq.s32.totalorder %s17, 0
    %p58 = por %p56, %p57
    %s59 = sadd.s32 %s19, 1
    %s60 = smul.u32 %s59, 8
    %s61 = sadd.s32 %s26, 1
    %s62 = smul.u32 %s61, 8
    %s63 = ssub.s32 %s18, %s30
    %s64 = ssub.s32 %s60, %s62
    %s65 = sor.u32 %s63, %s64
    %p66 = scmp.eq.s32.totalorder %s65, 0
    %s68 = sadd.s32 %s67, 1
    %s69 = scalar_select %p66, %s67, %s68
    %p72 = pneg %p66
    %p73 = scmp.eq.s32.totalorder %s11, 1
    %p74 = por %p72, %p73
    %p75 = scmp.ne.s32.totalorder %s67, %s70
    %p76 = scmp.eq.s32.totalorder %s11, 0
    %p77 = por %p75, %p76
    %p78 = scmp.ne.s32.totalorder %s67, %s70
    %p79 = scmp.eq.s32.totalorder %s16, 1
    %p80 = por %p78, %p79
    %p81 = scmp.ne.s32.totalorder %s70, %s71
    %p82 = scmp.eq.s32.totalorder %s16, 0
    %p83 = por %p81, %p82
    %p84 = scmp.ne.s32.totalorder %s70, %s71
    %p85 = scmp.eq.s32.totalorder %s17, 1
    %p86 = por %p84, %p85
    %p88 = scmp.ne.s32.totalorder %s71, %s87
    %p89 = scmp.eq.s32.totalorder %s17, 0
    %p90 = por %p88, %p89
    %s92 = sadd.s32 %s91, 1
    %p95 = scmp.eq.s32.totalorder %s11, 1
    %p96 = scmp.ne.s32.totalorder %s91, %s93
    %p97 = scmp.eq.s32.totalorder %s11, 0
    %p98 = por %p96, %p97
    %p99 = scmp.ne.s32.totalorder %s91, %s93
    %p100 = scmp.eq.s32.totalorder %s16, 1
    %p101 = por %p99, %p100
    %p102 = scmp.ne.s32.totalorder %s93, %s94
    %p103 = scmp.eq.s32.totalorder %s16, 0
    %p104 = por %p102, %p103
    %p105 = scmp.ne.s32.totalorder %s93, %s94
    %p106 = scmp.eq.s32.totalorder %s17, 1
    %p107 = por %p105, %p106
    %p109 = scmp.ne.s32.totalorder %s94, %s108
    %p110 = scmp.eq.s32.totalorder %s17, 0
    %p111 = por %p109, %p110
    %s113 = sadd.s32 %s112, 1
    %p116 = scmp.eq.s32.totalorder %s11, 1
    %p117 = scmp.ne.s32.totalorder %s112, %s114
    %p118 = scmp.eq.s32.totalorder %s11, 0
    %p119 = por %p117, %p118
    %p120 = scmp.ne.s32.totalorder %s112, %s114
    %p121 = scmp.eq.s32.totalorder %s16, 1
    %p122 = por %p120, %p121
    %p123 = scmp.ne.s32.totalorder %s114, %s115
    %p124 = scmp.eq.s32.totalorder %s16, 0
    %p125 = por %p123, %p124
    %p126 = scmp.ne.s32.totalorder %s114, %s115
    %p127 = scmp.eq.s32.totalorder %s17, 1
    %p128 = por %p126, %p127
    %p130 = scmp.ne.s32.totalorder %s115, %s129
    %p131 = scmp.eq.s32.totalorder %s17, 0
    %p132 = por %p130, %p131
    %s134 = sadd.s32 %s133, 1
    %p137 = scmp.eq.s32.totalorder %s11, 1
    %p138 = scmp.ne.s32.totalorder %s133, %s135
    %p139 = scmp.eq.s32.totalorder %s11, 0
    %p140 = por %p138, %p139
    %p141 = scmp.ne.s32.totalorder %s133, %s135
    %p142 = scmp.eq.s32.totalorder %s16, 1
    %p143 = por %p141, %p142
    %p144 = scmp.ne.s32.totalorder %s135, %s136
    %p145 = scmp.eq.s32.totalorder %s16, 0
    %p146 = por %p144, %p145
    %p147 = scmp.ne.s32.totalorder %s135, %s136
    %p148 = scmp.eq.s32.totalorder %s17, 1
    %p149 = por %p147, %p148
    %p151 = scmp.ne.s32.totalorder %s136, %s150
    %p152 = scmp.eq.s32.totalorder %s17, 0
    %p153 = por %p151, %p152
    %s154 = sadd.s32 %s18, %s19
    %s155 = sadd.s32 %s30, %s26
    %s156 = ssub.s32 %s154, %s155
    %p157 = scmp.eq.s32.totalorder %s156, 0
    %s159 = sadd.s32 %s158, 1
    %s160 = scalar_select %p157, %s158, %s159
    %p163 = pneg %p157
    %p164 = scmp.eq.s32.totalorder %s11, 1
    %p165 = por %p163, %p164
    %p166 = scmp.ne.s32.totalorder %s158, %s161
    %p167 = scmp.eq.s32.totalorder %s11, 0
    %p168 = por %p166, %p167
    %p169 = scmp.ne.s32.totalorder %s158, %s161
    %p170 = scmp.eq.s32.totalorder %s16, 1
    %p171 = por %p169, %p170
    %p172 = scmp.ne.s32.totalorder %s161, %s162
    %p173 = scmp.eq.s32.totalorder %s16, 0
    %p174 = por %p172, %p173
    %p175 = scmp.ne.s32.totalorder %s161, %s162
    %p176 = scmp.eq.s32.totalorder %s17, 1
    %p177 = por %p175, %p176
    %p179 = scmp.ne.s32.totalorder %s162, %s178
    %p180 = scmp.eq.s32.totalorder %s17, 0
    %p181 = por %p179, %p180
    %p182 = scmp.le.s32.totalorder 1, %s11
    %p183 = scmp.lt.s32.totalorder %s11, 3
    %p184 = pnand %p182, %p183
    %p185 = pneg %p184
    // Predicated region
    $region9: #{upsample_transition.1} parent=5 // pred_check
      _
    $region10: #{upsample_transition.1} parent=5 // pred_check_branch
      %187 = sbr.rel (%p184) target = $region12
    $region11: #{upsample_transition.1} parent=5 // pred_region
      %s188 = ssub.s32 %s11, 1
      // Predicated region
      $region13: #{upsample_transition.1} parent=11 // pred_check
        %p189 = pneg %p104
      $region14: #{upsample_transition.1} parent=11 // pred_check_branch
        %191 = sbr.rel (%p189) target = $region16
      $region15: #{upsample_transition.1} parent=11 // pred_region
        _
      $region16: #{upsample_transition.1} parent=11 // pred_fallthru
        _
      // Predicated region
      $region17: #{upsample_transition.1} parent=11 // pred_check
        %p192 = pneg %p125
      $region18: #{upsample_transition.1} parent=11 // pred_check_branch
        %194 = sbr.rel (%p192) target = $region20
      $region19: #{upsample_transition.1} parent=11 // pred_region
        _
      $region20: #{upsample_transition.1} parent=11 // pred_fallthru
        _
      // Predicated region
      $region21: #{upsample_transition.1} parent=11 // pred_check
        %p195 = pneg %p146
      $region22: #{upsample_transition.1} parent=11 // pred_check_branch
        %197 = sbr.rel (%p195) target = $region24
      $region23: #{upsample_transition.1} parent=11 // pred_region
        _
      $region24: #{upsample_transition.1} parent=11 // pred_fallthru
        _
    $region12: #{upsample_transition.1} parent=5 // pred_fallthru
      _
    %p198 = scmp.lt.s32.totalorder %s11, 2
    // Predicated region
    $region25: #{upsample_transition.1} parent=5 // pred_check
      %p199 = pneg %p198
    $region26: #{upsample_transition.1} parent=5 // pred_check_branch
      %201 = sbr.rel (%p199) target = $region28
    $region27: #{upsample_transition.1} parent=5 // pred_region
      // Predicated region
      $region29: #{upsample_transition.1} parent=27 // pred_check
        %p202 = pneg %p45
      $region30: #{upsample_transition.1} parent=27 // pred_check_branch
        %204 = sbr.rel (%p202) target = $region32
      $region31: #{upsample_transition.1} parent=27 // pred_region
        %s205 = smul.u32 16, %s19
        %s206 = ssub.s32 18, %s205
        %p207 = scmp.lt.s32.totalorder %s206, 16
        %s208 = scalar_select %p207, %s206, 16
        %s209 = smul.u32 128, %s208
        %s210 = smul.u32 %s209, 3
        %p211 = scmp.lt.s32.totalorder %s18, 1
        %s212 = scalar_select %p211, %s18, 1
        %p213 = scmp.lt.s32.totalorder %s205, 17
        %s214 = scalar_select %p213, %s205, 17
        %s215 = smul.addr %s214, 3
        %s216 = smul.addr %s212, 54
        %s217 = sadd.s32 %s215, %s216
        %s218 = smul.addr %s217, 8
        %s219 = scalar_lea.vmem %s0, %s218
        %s220 = smul.u32 16, %s19
        %s221 = ssub.s32 18, %s220
        %p222 = scmp.lt.s32.totalorder %s221, 16
        %s223 = scalar_select %p222, %s221, 16
        %s224 = smul.u32 128, %s223
        %s225 = smul.u32 %s224, 3
      $region32: #{upsample_transition.1} parent=27 // pred_fallthru
        _
      // Predicated region
      $region33: #{upsample_transition.1} parent=27 // pred_check
        %p226 = pneg %p77
      $region34: #{upsample_transition.1} parent=27 // pred_check_branch
        %228 = sbr.rel (%p226) target = $region36
      $region35: #{upsample_transition.1} parent=27 // pred_region
        %s229 = sadd.s32 %s19, 1
        %s230 = smul.u32 %s229, 8
        %s231 = smul.u32 2, %s230
        %p232 = scmp.lt.s32.totalorder %s18, 1
        %s233 = scalar_select %p232, %s18, 1
        %p234 = scmp.lt.s32.totalorder %s231, 17
        %s235 = scalar_select %p234, %s231, 17
        %s236 = smul.addr %s235, 3
        %s237 = smul.addr %s233, 54
        %s238 = sadd.s32 %s236, %s237
        %s239 = smul.addr %s238, 8
        %s240 = scalar_lea.vmem %s1, %s239
        %s241 = sadd.s32 %s19, 1
        %s242 = smul.u32 %s241, 8
        %s243 = smul.u32 2, %s242
      $region36: #{upsample_transition.1} parent=27 // pred_fallthru
        _
    $region28: #{upsample_transition.1} parent=5 // pred_fallthru
      _
    %p244 = scmp.le.s32.totalorder 1, %s11
    %p245 = scmp.lt.s32.totalorder %s11, 3
    %p246 = pnand %p244, %p245
    %p247 = pneg %p246
    // Predicated region
    $region37: #{upsample_transition.1} parent=5 // pred_check
      _
    $region38: #{upsample_transition.1} parent=5 // pred_check_branch
      %249 = sbr.rel (%p246) target = $region40
    $region39: #{upsample_transition.1} parent=5 // pred_region
      %s250 = ssub.s32 %s11, 1
      %s251 = smul.u32 16, %s21
      %s252 = ssub.s32 18, %s251
      %p253 = scmp.lt.s32.totalorder %s252, 16
      %s254 = scalar_select %p253, %s252, 16
      %s255 = smul.u32 128, %s254
      %s256 = smul.u32 %s255, 3
      %p257 = scmp.lt.s32.totalorder %s20, 1
      %s258 = scalar_select %p257, %s20, 1
      %p259 = scmp.lt.s32.totalorder %s251, 17
      %s260 = scalar_select %p259, %s251, 17
      %s261 = smul.addr %s260, 3
      %s262 = smul.addr %s258, 54
      %s263 = sadd.s32 %s261, %s262
      %s264 = smul.addr %s263, 8
      %s265 = scalar_lea.vmem %s0, %s264
      %p266 = pneg %p51
      %p267 = pneg %p48
      %s268 = sadd.s32 %s21, 1
      %s269 = smul.u32 %s268, 8
      %s270 = smul.u32 2, %s269
      %p271 = scmp.lt.s32.totalorder %s20, 1
      %s272 = scalar_select %p271, %s20, 1
      %p273 = scmp.lt.s32.totalorder %s270, 17
      %s274 = scalar_select %p273, %s270, 17
      %s275 = smul.addr %s274, 3
      %s276 = smul.addr %s272, 54
      %s277 = sadd.s32 %s275, %s276
      %s278 = smul.addr %s277, 8
      %s279 = scalar_lea.vmem %s1, %s278
      %p280 = pneg %p83
      %p281 = pneg %p80
      %p282 = pneg %p104
      %p283 = pneg %p101
      %p284 = pneg %p125
      %p285 = pneg %p122
      %p286 = pneg %p146
      %p287 = pneg %p143
      %p288 = pneg %p174
      %p289 = pneg %p171
      %s290 = sadd.s32 %s20, %s21
      %s291 = smul.u32 16, %s290
      %p292 = scmp.lt.s32.totalorder %s291, 31
      %s293 = scalar_select %p292, %s291, 31
      %s294 = smul.addr %s293, 4
      %s295 = smul.addr %s294, 8
      %s296 = scalar_lea.vmem %s5, %s295
      %s297 = smul.u32 16, %s21
      %s298 = ssub.s32 18, %s297
      %p299 = scmp.lt.s32.totalorder %s298, 16
      %s300 = scalar_select %p299, %s298, 16
      %s301 = smul.u32 128, %s300
      %s302 = smul.u32 %s301, 3
      %p303 = scmp.lt.s32.totalorder %s20, 1
      %s304 = scalar_select %p303, %s20, 1
      %p305 = scmp.lt.s32.totalorder %s297, 17
      %s306 = scalar_select %p305, %s297, 17
      %s307 = smul.addr %s306, 3
      %s308 = smul.addr %s304, 54
      %s309 = sadd.s32 %s307, %s308
      %s310 = smul.addr %s309, 8
      %s311 = scalar_lea.vmem %s0, %s310
      %s312 = smul.u32 16, %s21
      %s313 = ssub.s32 18, %s312
      %p314 = scmp.lt.s32.totalorder %s313, 16
      %s315 = scalar_select %p314, %s313, 16
      %s316 = smul.u32 128, %s315
      %s317 = smul.u32 %s316, 3
      %s318 = sadd.s32 %s21, 1
      %s319 = smul.u32 %s318, 8
      %s320 = smul.u32 2, %s319
      %p321 = scmp.lt.s32.totalorder %s20, 1
      %s322 = scalar_select %p321, %s20, 1
      %p323 = scmp.lt.s32.totalorder %s320, 17
      %s324 = scalar_select %p323, %s320, 17
      %s325 = smul.addr %s324, 3
      %s326 = smul.addr %s322, 54
      %s327 = sadd.s32 %s325, %s326
      %s328 = smul.addr %s327, 8
      %s329 = scalar_lea.vmem %s1, %s328
      %s330 = sadd.s32 %s21, 1
      %s331 = smul.u32 %s330, 8
      %s332 = smul.u32 2, %s331
      %s333 = sadd.s32 %s20, %s21
      %s334 = smul.u32 16, %s333
      %p335 = scmp.lt.s32.totalorder %s334, 31
      %s336 = scalar_select %p335, %s334, 31
      %s337 = smul.addr %s336, 4
      %s338 = smul.addr %s337, 8
      %s339 = scalar_lea.vmem %s5, %s338
      %s340 = sadd.s32 %s20, %s21
      %s341 = smul.u32 16, %s340
      %v342 = vld [vmem:[%s311] sm:$0xff]
      %v343 = vld [vmem:[%s311 + $0x8] sm:$0xff]
      %v344 = vld [vmem:[%s311 + $0x10] sm:$0x3]
      %v345 = vld [vmem:[%s311 + $0x18] sm:$0xff]
      %v346 = vld [vmem:[%s311 + $0x20] sm:$0xff]
      %v347 = vld [vmem:[%s311 + $0x28] sm:$0x3]
      %v348 = vld [vmem:[%s311 + $0x30] sm:$0xff]
      %v349 = vld [vmem:[%s311 + $0x38] sm:$0xff]
      %v350 = vld [vmem:[%s311 + $0x40] sm:$0x3]
      %v351 = vld [vmem:[%s311 + $0x48] sm:$0xff]
      %v352 = vld [vmem:[%s311 + $0x50] sm:$0xff]
      %v353 = vld [vmem:[%s311 + $0x58] sm:$0x3]
      %v354 = vld [vmem:[%s311 + $0x60] sm:$0xff]
      %v355 = vld [vmem:[%s311 + $0x68] sm:$0xff]
      %v356 = vld [vmem:[%s311 + $0x70] sm:$0x3]
      %v357 = vld [vmem:[%s311 + $0x78] sm:$0xff]
      %v358 = vld [vmem:[%s311 + $0x80] sm:$0xff]
      %v359 = vld [vmem:[%s311 + $0x88] sm:$0x3]
      %v360 = vld [vmem:[%s311 + $0x90] sm:$0xff]
      %v361 = vld [vmem:[%s311 + $0x98] sm:$0xff]
      %v362 = vld [vmem:[%s311 + $0xa0] sm:$0x3]
      %v363 = vld [vmem:[%s311 + $0xa8] sm:$0xff]
      %v364 = vld [vmem:[%s311 + $0xb0] sm:$0xff]
      %v365 = vld [vmem:[%s311 + $0xb8] sm:$0x3]
      %v366 = vld [vmem:[%s311 + $0xc0] sm:$0xff]
      %v367 = vld [vmem:[%s311 + $0xc8] sm:$0xff]
      %v368 = vld [vmem:[%s311 + $0xd0] sm:$0x3]
      %v369 = vld [vmem:[%s311 + $0xd8] sm:$0xff]
      %v370 = vld [vmem:[%s311 + $0xe0] sm:$0xff]
      %v371 = vld [vmem:[%s311 + $0xe8] sm:$0x3]
      %v372 = vld [vmem:[%s311 + $0xf0] sm:$0xff]
      %v373 = vld [vmem:[%s311 + $0xf8] sm:$0xff]
      %v374 = vld [vmem:[%s311 + $0x100] sm:$0x3]
      %v375 = vld [vmem:[%s311 + $0x108] sm:$0xff]
      %v376 = vld [vmem:[%s311 + $0x110] sm:$0xff]
      %v377 = vld [vmem:[%s311 + $0x118] sm:$0x3]
      %v378 = vld [vmem:[%s311 + $0x120] sm:$0xff]
      %v379 = vld [vmem:[%s311 + $0x128] sm:$0xff]
      %v380 = vld [vmem:[%s311 + $0x130] sm:$0x3]
      %v381 = vld [vmem:[%s311 + $0x138] sm:$0xff]
      %v382 = vld [vmem:[%s311 + $0x140] sm:$0xff]
      %v383 = vld [vmem:[%s311 + $0x148] sm:$0x3]
      %v384 = vld [vmem:[%s311 + $0x150] sm:$0xff]
      %v385 = vld [vmem:[%s311 + $0x158] sm:$0xff]
      %v386 = vld [vmem:[%s311 + $0x160] sm:$0x3]
      %v387 = vld [vmem:[%s311 + $0x168] sm:$0xff]
      %v388 = vld [vmem:[%s311 + $0x170] sm:$0xff]
      %v389 = vld [vmem:[%s311 + $0x178] sm:$0x3]
      %v390 = vld [vmem:[%s329] sm:$0xff]
      %v391 = vld [vmem:[%s329 + $0x8] sm:$0xff]
      %v392 = vld [vmem:[%s329 + $0x10] sm:$0x3]
      %v393 = vld [vmem:[%s329 + $0x18] sm:$0xff]
      %v394 = vld [vmem:[%s329 + $0x20] sm:$0xff]
      %v395 = vld [vmem:[%s329 + $0x28] sm:$0x3]
      %v396 = vld [vmem:[%s2] sm:$0x1]
      %v398 = vlaneseq
      %v399 = vshrl.u32 %v398, 7
      %v400 = vsub.s32 0, %v399
      %v401 = vrot.slane %v396, %v400
      %v403 = vmul.f32 %v342, %v401
      %v404 = vmul.f32 %v343, %v401
      %v405 = vmul.f32 %v344, %v401
      %v406 = vmul.f32 %v345, %v401
      %v407 = vmul.f32 %v346, %v401
      %v408 = vmul.f32 %v347, %v401
      %v409 = vmul.f32 %v348, %v401
      %v410 = vmul.f32 %v349, %v401
      %v411 = vmul.f32 %v350, %v401
      %v412 = vmul.f32 %v351, %v401
      %v413 = vmul.f32 %v352, %v401
      %v414 = vmul.f32 %v353, %v401
      %v415 = vmul.f32 %v354, %v401
      %v416 = vmul.f32 %v355, %v401
      %v417 = vmul.f32 %v356, %v401
      %v418 = vmul.f32 %v357, %v401
      %v419 = vmul.f32 %v358, %v401
      %v420 = vmul.f32 %v359, %v401
      %v421 = vmul.f32 %v360, %v401
      %v422 = vmul.f32 %v361, %v401
      %v423 = vmul.f32 %v362, %v401
      %v424 = vmul.f32 %v363, %v401
      %v425 = vmul.f32 %v364, %v401
      %v426 = vmul.f32 %v365, %v401
      %v427 = vmul.f32 %v366, %v401
      %v428 = vmul.f32 %v367, %v401
      %v429 = vmul.f32 %v368, %v401
      %v430 = vmul.f32 %v369, %v401
      %v431 = vmul.f32 %v370, %v401
      %v432 = vmul.f32 %v371, %v401
      %v433 = vmul.f32 %v372, %v401
      %v434 = vmul.f32 %v373, %v401
      %v435 = vmul.f32 %v374, %v401
      %v436 = vmul.f32 %v375, %v401
      %v437 = vmul.f32 %v376, %v401
      %v438 = vmul.f32 %v377, %v401
      %v439 = vmul.f32 %v378, %v401
      %v440 = vmul.f32 %v379, %v401
      %v441 = vmul.f32 %v380, %v401
      %v442 = vmul.f32 %v381, %v401
      %v443 = vmul.f32 %v382, %v401
      %v444 = vmul.f32 %v383, %v401
      %v445 = vmul.f32 %v384, %v401
      %v446 = vmul.f32 %v385, %v401
      %v447 = vmul.f32 %v386, %v401
      %v448 = vmul.f32 %v387, %v401
      %v449 = vmul.f32 %v388, %v401
      %v450 = vmul.f32 %v389, %v401
      %v451 = vmul.f32 %v390, %v401
      %v452 = vmul.f32 %v391, %v401
      %v453 = vmul.f32 %v392, %v401
      %v454 = vmul.f32 %v393, %v401
      %v455 = vmul.f32 %v394, %v401
      %v456 = vmul.f32 %v395, %v401
      %v457 = vld [vmem:[%s3] sm:$0x1]
      %v459 = vlaneseq
      %v460 = vshrl.u32 %v459, 7
      %v461 = vsub.s32 0, %v460
      %v462 = vrot.slane %v457, %v461
      %v464 = vadd.f32 %v403, %v462
      %v465 = vadd.f32 %v404, %v462
      %v466 = vadd.f32 %v405, %v462
      %v467 = vadd.f32 %v406, %v462
      %v468 = vadd.f32 %v407, %v462
      %v469 = vadd.f32 %v408, %v462
      %v470 = vadd.f32 %v409, %v462
      %v471 = vadd.f32 %v410, %v462
      %v472 = vadd.f32 %v411, %v462
      %v473 = vadd.f32 %v412, %v462
      %v474 = vadd.f32 %v413, %v462
      %v475 = vadd.f32 %v414, %v462
      %v476 = vadd.f32 %v415, %v462
      %v477 = vadd.f32 %v416, %v462
      %v478 = vadd.f32 %v417, %v462
      %v479 = vadd.f32 %v418, %v462
      %v480 = vadd.f32 %v419, %v462
      %v481 = vadd.f32 %v420, %v462
      %v482 = vadd.f32 %v421, %v462
      %v483 = vadd.f32 %v422, %v462
      %v484 = vadd.f32 %v423, %v462
      %v485 = vadd.f32 %v424, %v462
      %v486 = vadd.f32 %v425, %v462
      %v487 = vadd.f32 %v426, %v462
      %v488 = vadd.f32 %v427, %v462
      %v489 = vadd.f32 %v428, %v462
      %v490 = vadd.f32 %v429, %v462
      %v491 = vadd.f32 %v430, %v462
      %v492 = vadd.f32 %v431, %v462
      %v493 = vadd.f32 %v432, %v462
      %v494 = vadd.f32 %v433, %v462
      %v495 = vadd.f32 %v434, %v462
      %v496 = vadd.f32 %v435, %v462
      %v497 = vadd.f32 %v436, %v462
      %v498 = vadd.f32 %v437, %v462
      %v499 = vadd.f32 %v438, %v462
      %v500 = vadd.f32 %v439, %v462
      %v501 = vadd.f32 %v440, %v462
      %v502 = vadd.f32 %v441, %v462
      %v503 = vadd.f32 %v442, %v462
      %v504 = vadd.f32 %v443, %v462
      %v505 = vadd.f32 %v444, %v462
      %v506 = vadd.f32 %v445, %v462
      %v507 = vadd.f32 %v446, %v462
      %v508 = vadd.f32 %v447, %v462
      %v509 = vadd.f32 %v448, %v462
      %v510 = vadd.f32 %v449, %v462
      %v511 = vadd.f32 %v450, %v462
      %v512 = vadd.f32 %v451, %v462
      %v513 = vadd.f32 %v452, %v462
      %v514 = vadd.f32 %v453, %v462
      %v515 = vadd.f32 %v454, %v462
      %v516 = vadd.f32 %v455, %v462
      %v517 = vadd.f32 %v456, %v462
      %v518 = vmul.f32 %v464, 0.25
      %v519 = vmul.f32 %v465, 0.25
      %v520 = vmul.f32 %v466, 0.25
      %v521 = vmul.f32 %v467, 0.25
      %v522 = vmul.f32 %v468, 0.25
      %v523 = vmul.f32 %v469, 0.25
      %v524 = vmul.f32 %v470, 0.25
      %v525 = vmul.f32 %v471, 0.25
      %v526 = vmul.f32 %v472, 0.25
      %v527 = vmul.f32 %v473, 0.25
      %v528 = vmul.f32 %v474, 0.25
      %v529 = vmul.f32 %v475, 0.25
      %v530 = vmul.f32 %v476, 0.25
      %v531 = vmul.f32 %v477, 0.25
      %v532 = vmul.f32 %v478, 0.25
      %v533 = vmul.f32 %v479, 0.25
      %v534 = vmul.f32 %v480, 0.25
      %v535 = vmul.f32 %v481, 0.25
      %v536 = vmul.f32 %v482, 0.25
      %v537 = vmul.f32 %v483, 0.25
      %v538 = vmul.f32 %v484, 0.25
      %v539 = vmul.f32 %v485, 0.25
      %v540 = vmul.f32 %v486, 0.25
      %v541 = vmul.f32 %v487, 0.25
      %v542 = vmul.f32 %v488, 0.25
      %v543 = vmul.f32 %v489, 0.25
      %v544 = vmul.f32 %v490, 0.25
      %v545 = vmul.f32 %v491, 0.25
      %v546 = vmul.f32 %v492, 0.25
      %v547 = vmul.f32 %v493, 0.25
      %v548 = vmul.f32 %v494, 0.25
      %v549 = vmul.f32 %v495, 0.25
      %v550 = vmul.f32 %v496, 0.25
      %v551 = vmul.f32 %v497, 0.25
      %v552 = vmul.f32 %v498, 0.25
      %v553 = vmul.f32 %v499, 0.25
      %v554 = vmul.f32 %v500, 0.25
      %v555 = vmul.f32 %v501, 0.25
      %v556 = vmul.f32 %v502, 0.25
      %v557 = vmul.f32 %v503, 0.25
      %v558 = vmul.f32 %v504, 0.25
      %v559 = vmul.f32 %v505, 0.25
      %v560 = vmul.f32 %v506, 0.25
      %v561 = vmul.f32 %v507, 0.25
      %v562 = vmul.f32 %v508, 0.25
      %v563 = vmul.f32 %v509, 0.25
      %v564 = vmul.f32 %v510, 0.25
      %v565 = vmul.f32 %v511, 0.25
      %v566 = vmul.f32 %v467, 0.75
      %v567 = vmul.f32 %v468, 0.75
      %v568 = vmul.f32 %v469, 0.75
      %v569 = vmul.f32 %v470, 0.75
      %v570 = vmul.f32 %v471, 0.75
      %v571 = vmul.f32 %v472, 0.75
      %v572 = vmul.f32 %v473, 0.75
      %v573 = vmul.f32 %v474, 0.75
      %v574 = vmul.f32 %v475, 0.75
      %v575 = vmul.f32 %v476, 0.75
      %v576 = vmul.f32 %v477, 0.75
      %v577 = vmul.f32 %v478, 0.75
      %v578 = vmul.f32 %v479, 0.75
      %v579 = vmul.f32 %v480, 0.75
      %v580 = vmul.f32 %v481, 0.75
      %v581 = vmul.f32 %v482, 0.75
      %v582 = vmul.f32 %v483, 0.75
      %v583 = vmul.f32 %v484, 0.75
      %v584 = vmul.f32 %v485, 0.75
      %v585 = vmul.f32 %v486, 0.75
      %v586 = vmul.f32 %v487, 0.75
      %v587 = vmul.f32 %v488, 0.75
      %v588 = vmul.f32 %v489, 0.75
      %v589 = vmul.f32 %v490, 0.75
      %v590 = vmul.f32 %v491, 0.75
      %v591 = vmul.f32 %v492, 0.75
      %v592 = vmul.f32 %v493, 0.75
      %v593 = vmul.f32 %v494, 0.75
      %v594 = vmul.f32 %v495, 0.75
      %v595 = vmul.f32 %v496, 0.75
      %v596 = vmul.f32 %v497, 0.75
      %v597 = vmul.f32 %v498, 0.75
      %v598 = vmul.f32 %v499, 0.75
      %v599 = vmul.f32 %v500, 0.75
      %v600 = vmul.f32 %v501, 0.75
      %v601 = vmul.f32 %v502, 0.75
      %v602 = vmul.f32 %v503, 0.75
      %v603 = vmul.f32 %v504, 0.75
      %v604 = vmul.f32 %v505, 0.75
      %v605 = vmul.f32 %v506, 0.75
      %v606 = vmul.f32 %v507, 0.75
      %v607 = vmul.f32 %v508, 0.75
      %v608 = vmul.f32 %v509, 0.75
      %v609 = vmul.f32 %v510, 0.75
      %v610 = vmul.f32 %v511, 0.75
      %v611 = vmul.f32 %v512, 0.75
      %v612 = vmul.f32 %v513, 0.75
      %v613 = vmul.f32 %v514, 0.75
      %v614 = vadd.f32 %v518, %v566
      %v615 = vadd.f32 %v519, %v567
      %v616 = vadd.f32 %v520, %v568
      %v617 = vadd.f32 %v521, %v569
      %v618 = vadd.f32 %v522, %v570
      %v619 = vadd.f32 %v523, %v571
      %v620 = vadd.f32 %v524, %v572
      %v621 = vadd.f32 %v525, %v573
      %v622 = vadd.f32 %v526, %v574
      %v623 = vadd.f32 %v527, %v575
      %v624 = vadd.f32 %v528, %v576
      %v625 = vadd.f32 %v529, %v577
      %v626 = vadd.f32 %v530, %v578
      %v627 = vadd.f32 %v531, %v579
      %v628 = vadd.f32 %v532, %v580
      %v629 = vadd.f32 %v533, %v581
      %v630 = vadd.f32 %v534, %v582
      %v631 = vadd.f32 %v535, %v583
      %v632 = vadd.f32 %v536, %v584
      %v633 = vadd.f32 %v537, %v585
      %v634 = vadd.f32 %v538, %v586
      %v635 = vadd.f32 %v539, %v587
      %v636 = vadd.f32 %v540, %v588
      %v637 = vadd.f32 %v541, %v589
      %v638 = vadd.f32 %v542, %v590
      %v639 = vadd.f32 %v543, %v591
      %v640 = vadd.f32 %v544, %v592
      %v641 = vadd.f32 %v545, %v593
      %v642 = vadd.f32 %v546, %v594
      %v643 = vadd.f32 %v547, %v595
      %v644 = vadd.f32 %v548, %v596
      %v645 = vadd.f32 %v549, %v597
      %v646 = vadd.f32 %v550, %v598
      %v647 = vadd.f32 %v551, %v599
      %v648 = vadd.f32 %v552, %v600
      %v649 = vadd.f32 %v553, %v601
      %v650 = vadd.f32 %v554, %v602
      %v651 = vadd.f32 %v555, %v603
      %v652 = vadd.f32 %v556, %v604
      %v653 = vadd.f32 %v557, %v605
      %v654 = vadd.f32 %v558, %v606
      %v655 = vadd.f32 %v559, %v607
      %v656 = vadd.f32 %v560, %v608
      %v657 = vadd.f32 %v561, %v609
      %v658 = vadd.f32 %v562, %v610
      %v659 = vadd.f32 %v563, %v611
      %v660 = vadd.f32 %v564, %v612
      %v661 = vadd.f32 %v565, %v613
      %v662 = vmul.f32 %v512, 0.25
      %v663 = vmul.f32 %v513, 0.25
      %v664 = vmul.f32 %v514, 0.25
      %v665 = vmul.f32 %v515, 0.25
      %v666 = vmul.f32 %v516, 0.25
      %v667 = vmul.f32 %v517, 0.25
      %v668 = vadd.f32 %v566, %v524
      %v669 = vadd.f32 %v567, %v525
      %v670 = vadd.f32 %v568, %v526
      %v671 = vadd.f32 %v569, %v527
      %v672 = vadd.f32 %v570, %v528
      %v673 = vadd.f32 %v571, %v529
      %v674 = vadd.f32 %v572, %v530
      %v675 = vadd.f32 %v573, %v531
      %v676 = vadd.f32 %v574, %v532
      %v677 = vadd.f32 %v575, %v533
      %v678 = vadd.f32 %v576, %v534
      %v679 = vadd.f32 %v577, %v535
      %v680 = vadd.f32 %v578, %v536
      %v681 = vadd.f32 %v579, %v537
      %v682 = vadd.f32 %v580, %v538
      %v683 = vadd.f32 %v581, %v539
      %v684 = vadd.f32 %v582, %v540
      %v685 = vadd.f32 %v583, %v541
      %v686 = vadd.f32 %v584, %v542
      %v687 = vadd.f32 %v585, %v543
      %v688 = vadd.f32 %v586, %v544
      %v689 = vadd.f32 %v587, %v545
      %v690 = vadd.f32 %v588, %v546
      %v691 = vadd.f32 %v589, %v547
      %v692 = vadd.f32 %v590, %v548
      %v693 = vadd.f32 %v591, %v549
      %v694 = vadd.f32 %v592, %v550
      %v695 = vadd.f32 %v593, %v551
      %v696 = vadd.f32 %v594, %v552
      %v697 = vadd.f32 %v595, %v553
      %v698 = vadd.f32 %v596, %v554
      %v699 = vadd.f32 %v597, %v555
      %v700 = vadd.f32 %v598, %v556
      %v701 = vadd.f32 %v599, %v557
      %v702 = vadd.f32 %v600, %v558
      %v703 = vadd.f32 %v601, %v559
      %v704 = vadd.f32 %v602, %v560
      %v705 = vadd.f32 %v603, %v561
      %v706 = vadd.f32 %v604, %v562
      %v707 = vadd.f32 %v605, %v563
      %v708 = vadd.f32 %v606, %v564
      %v709 = vadd.f32 %v607, %v565
      %v710 = vadd.f32 %v608, %v662
      %v711 = vadd.f32 %v609, %v663
      %v712 = vadd.f32 %v610, %v664
      %v713 = vadd.f32 %v611, %v665
      %v714 = vadd.f32 %v612, %v666
      %v715 = vadd.f32 %v613, %v667
      %v716 = vmul.f32 %v614, 0.25
      %v717 = vmul.f32 %v615, 0.25
      %v718 = vmul.f32 %v617, 0.25
      %v719 = vmul.f32 %v618, 0.25
      %v720 = vmul.f32 %v620, 0.25
      %v721 = vmul.f32 %v621, 0.25
      %v722 = vmul.f32 %v623, 0.25
      %v723 = vmul.f32 %v624, 0.25
      %v724 = vmul.f32 %v626, 0.25
      %v725 = vmul.f32 %v627, 0.25
      %v726 = vmul.f32 %v629, 0.25
      %v727 = vmul.f32 %v630, 0.25
      %v728 = vmul.f32 %v632, 0.25
      %v729 = vmul.f32 %v633, 0.25
      %v730 = vmul.f32 %v635, 0.25
      %v731 = vmul.f32 %v636, 0.25
      %v732 = vmul.f32 %v638, 0.25
      %v733 = vmul.f32 %v639, 0.25
      %v734 = vmul.f32 %v641, 0.25
      %v735 = vmul.f32 %v642, 0.25
      %v736 = vmul.f32 %v644, 0.25
      %v737 = vmul.f32 %v645, 0.25
      %v738 = vmul.f32 %v647, 0.25
      %v739 = vmul.f32 %v648, 0.25
      %v740 = vmul.f32 %v650, 0.25
      %v741 = vmul.f32 %v651, 0.25
      %v742 = vmul.f32 %v653, 0.25
      %v743 = vmul.f32 %v654, 0.25
      %v744 = vmul.f32 %v656, 0.25
      %v745 = vmul.f32 %v657, 0.25
      %v746 = vmul.f32 %v659, 0.25
      %v747 = vmul.f32 %v660, 0.25
      %v748 = vmul.f32 %v614, 0.75
      %v749 = vmul.f32 %v615, 0.75
      %v750 = vmul.f32 %v616, 0.75
      %v751 = vmul.f32 %v617, 0.75
      %v752 = vmul.f32 %v618, 0.75
      %v753 = vmul.f32 %v619, 0.75
      %v754 = vmul.f32 %v620, 0.75
      %v755 = vmul.f32 %v621, 0.75
      %v756 = vmul.f32 %v622, 0.75
      %v757 = vmul.f32 %v623, 0.75
      %v758 = vmul.f32 %v624, 0.75
      %v759 = vmul.f32 %v625, 0.75
      %v760 = vmul.f32 %v626, 0.75
      %v761 = vmul.f32 %v627, 0.75
      %v762 = vmul.f32 %v628, 0.75
      %v763 = vmul.f32 %v629, 0.75
      %v764 = vmul.f32 %v630, 0.75
      %v765 = vmul.f32 %v631, 0.75
      %v766 = vmul.f32 %v632, 0.75
      %v767 = vmul.f32 %v633, 0.75
      %v768 = vmul.f32 %v634, 0.75
      %v769 = vmul.f32 %v635, 0.75
      %v770 = vmul.f32 %v636, 0.75
      %v771 = vmul.f32 %v637, 0.75
      %v772 = vmul.f32 %v638, 0.75
      %v773 = vmul.f32 %v639, 0.75
      %v774 = vmul.f32 %v640, 0.75
      %v775 = vmul.f32 %v641, 0.75
      %v776 = vmul.f32 %v642, 0.75
      %v777 = vmul.f32 %v643, 0.75
      %v778 = vmul.f32 %v644, 0.75
      %v779 = vmul.f32 %v645, 0.75
      %v780 = vmul.f32 %v646, 0.75
      %v781 = vmul.f32 %v647, 0.75
      %v782 = vmul.f32 %v648, 0.75
      %v783 = vmul.f32 %v649, 0.75
      %v784 = vmul.f32 %v650, 0.75
      %v785 = vmul.f32 %v651, 0.75
      %v786 = vmul.f32 %v652, 0.75
      %v787 = vmul.f32 %v653, 0.75
      %v788 = vmul.f32 %v654, 0.75
      %v789 = vmul.f32 %v655, 0.75
      %v790 = vmul.f32 %v656, 0.75
      %v791 = vmul.f32 %v657, 0.75
      %v792 = vmul.f32 %v658, 0.75
      %v793 = vmul.f32 %v659, 0.75
      %v794 = vmul.f32 %v660, 0.75
      %v795 = vmul.f32 %v661, 0.75
      %vm844 = vcmask 1046528
      %v845 = vrot.slane %v748, 1
      %v846 = vrot.slane %v749, 1
      %v847 = vsel %vm844, %v845, %v846
      %v848 = vrot.slane %v750, 1
      %v849 = vsel %vm844, %v846, %v848
      %v850 = vrot.slane %v751, 1
      %v851 = vrot.slane %v752, 1
      %v852 = vsel %vm844, %v850, %v851
      %v853 = vrot.slane %v753, 1
      %v854 = vsel %vm844, %v851, %v853
      %v855 = vrot.slane %v754, 1
      %v856 = vrot.slane %v755, 1
      %v857 = vsel %vm844, %v855, %v856
      %v858 = vrot.slane %v756, 1
      %v859 = vsel %vm844, %v856, %v858
      %v860 = vrot.slane %v757, 1
      %v861 = vrot.slane %v758, 1
      %v862 = vsel %vm844, %v860, %v861
      %v863 = vrot.slane %v759, 1
      %v864 = vsel %vm844, %v861, %v863
      %v865 = vrot.slane %v760, 1
      %v866 = vrot.slane %v761, 1
      %v867 = vsel %vm844, %v865, %v866
      %v868 = vrot.slane %v762, 1
      %v869 = vsel %vm844, %v866, %v868
      %v870 = vrot.slane %v763, 1
      %v871 = vrot.slane %v764, 1
      %v872 = vsel %vm844, %v870, %v871
      %v873 = vrot.slane %v765, 1
      %v874 = vsel %vm844, %v871, %v873
      %v875 = vrot.slane %v766, 1
      %v876 = vrot.slane %v767, 1
      %v877 = vsel %vm844, %v875, %v876
      %v878 = vrot.slane %v768, 1
      %v879 = vsel %vm844, %v876, %v878
      %v880 = vrot.slane %v769, 1
      %v881 = vrot.slane %v770, 1
      %v882 = vsel %vm844, %v880, %v881
      %v883 = vrot.slane %v771, 1
      %v884 = vsel %vm844, %v881, %v883
      %v885 = vrot.slane %v772, 1
      %v886 = vrot.slane %v773, 1
      %v887 = vsel %vm844, %v885, %v886
      %v888 = vrot.slane %v774, 1
      %v889 = vsel %vm844, %v886, %v888
      %v890 = vrot.slane %v775, 1
      %v891 = vrot.slane %v776, 1
      %v892 = vsel %vm844, %v890, %v891
      %v893 = vrot.slane %v777, 1
      %v894 = vsel %vm844, %v891, %v893
      %v895 = vrot.slane %v778, 1
      %v896 = vrot.slane %v779, 1
      %v897 = vsel %vm844, %v895, %v896
      %v898 = vrot.slane %v780, 1
      %v899 = vsel %vm844, %v896, %v898
      %v900 = vrot.slane %v781, 1
      %v901 = vrot.slane %v782, 1
      %v902 = vsel %vm844, %v900, %v901
      %v903 = vrot.slane %v783, 1
      %v904 = vsel %vm844, %v901, %v903
      %v905 = vrot.slane %v784, 1
      %v906 = vrot.slane %v785, 1
      %v907 = vsel %vm844, %v905, %v906
      %v908 = vrot.slane %v786, 1
      %v909 = vsel %vm844, %v906, %v908
      %v910 = vrot.slane %v787, 1
      %v911 = vrot.slane %v788, 1
      %v912 = vsel %vm844, %v910, %v911
      %v913 = vrot.slane %v789, 1
      %v914 = vsel %vm844, %v911, %v913
      %v915 = vrot.slane %v790, 1
      %v916 = vrot.slane %v791, 1
      %v917 = vsel %vm844, %v915, %v916
      %v918 = vrot.slane %v792, 1
      %v919 = vsel %vm844, %v916, %v918
      %v920 = vrot.slane %v793, 1
      %v921 = vrot.slane %v794, 1
      %v922 = vsel %vm844, %v920, %v921
      %v923 = vrot.slane %v795, 1
      %v924 = vsel %vm844, %v921, %v923
      %v957 = vadd.f32 %v716, %v847
      %v958 = vadd.f32 %v717, %v849
      %v959 = vadd.f32 %v718, %v852
      %v960 = vadd.f32 %v719, %v854
      %v961 = vadd.f32 %v720, %v857
      %v962 = vadd.f32 %v721, %v859
      %v963 = vadd.f32 %v722, %v862
      %v964 = vadd.f32 %v723, %v864
      %v965 = vadd.f32 %v724, %v867
      %v966 = vadd.f32 %v725, %v869
      %v967 = vadd.f32 %v726, %v872
      %v968 = vadd.f32 %v727, %v874
      %v969 = vadd.f32 %v728, %v877
      %v970 = vadd.f32 %v729, %v879
      %v971 = vadd.f32 %v730, %v882
      %v972 = vadd.f32 %v731, %v884
      %v973 = vadd.f32 %v732, %v887
      %v974 = vadd.f32 %v733, %v889
      %v975 = vadd.f32 %v734, %v892
      %v976 = vadd.f32 %v735, %v894
      %v977 = vadd.f32 %v736, %v897
      %v978 = vadd.f32 %v737, %v899
      %v979 = vadd.f32 %v738, %v902
      %v980 = vadd.f32 %v739, %v904
      %v981 = vadd.f32 %v740, %v907
      %v982 = vadd.f32 %v741, %v909
      %v983 = vadd.f32 %v742, %v912
      %v984 = vadd.f32 %v743, %v914
      %v985 = vadd.f32 %v744, %v917
      %v986 = vadd.f32 %v745, %v919
      %v987 = vadd.f32 %v746, %v922
      %v988 = vadd.f32 %v747, %v924
      %v989 = vmul.f32 %v616, 0.25
      %v990 = vmul.f32 %v619, 0.25
      %v991 = vmul.f32 %v622, 0.25
      %v992 = vmul.f32 %v625, 0.25
      %v993 = vmul.f32 %v628, 0.25
      %v994 = vmul.f32 %v631, 0.25
      %v995 = vmul.f32 %v634, 0.25
      %v996 = vmul.f32 %v637, 0.25
      %v997 = vmul.f32 %v640, 0.25
      %v998 = vmul.f32 %v643, 0.25
      %v999 = vmul.f32 %v646, 0.25
      %v1000 = vmul.f32 %v649, 0.25
      %v1001 = vmul.f32 %v652, 0.25
      %v1002 = vmul.f32 %v655, 0.25
      %v1003 = vmul.f32 %v658, 0.25
      %v1004 = vmul.f32 %v661, 0.25
      %v1053 = vrot.slane %v716, 1
      %v1054 = vrot.slane %v717, 1
      %v1055 = vsel %vm844, %v1053, %v1054
      %v1056 = vrot.slane %v989, 1
      %v1057 = vsel %vm844, %v1054, %v1056
      %v1058 = vrot.slane %v718, 1
      %v1059 = vrot.slane %v719, 1
      %v1060 = vsel %vm844, %v1058, %v1059
      %v1061 = vrot.slane %v990, 1
      %v1062 = vsel %vm844, %v1059, %v1061
      %v1063 = vrot.slane %v720, 1
      %v1064 = vrot.slane %v721, 1
      %v1065 = vsel %vm844, %v1063, %v1064
      %v1066 = vrot.slane %v991, 1
      %v1067 = vsel %vm844, %v1064, %v1066
      %v1068 = vrot.slane %v722, 1
      %v1069 = vrot.slane %v723, 1
      %v1070 = vsel %vm844, %v1068, %v1069
      %v1071 = vrot.slane %v992, 1
      %v1072 = vsel %vm844, %v1069, %v1071
      %v1073 = vrot.slane %v724, 1
      %v1074 = vrot.slane %v725, 1
      %v1075 = vsel %vm844, %v1073, %v1074
      %v1076 = vrot.slane %v993, 1
      %v1077 = vsel %vm844, %v1074, %v1076
      %v1078 = vrot.slane %v726, 1
      %v1079 = vrot.slane %v727, 1
      %v1080 = vsel %vm844, %v1078, %v1079
      %v1081 = vrot.slane %v994, 1
      %v1082 = vsel %vm844, %v1079, %v1081
      %v1083 = vrot.slane %v728, 1
      %v1084 = vrot.slane %v729, 1
      %v1085 = vsel %vm844, %v1083, %v1084
      %v1086 = vrot.slane %v995, 1
      %v1087 = vsel %vm844, %v1084, %v1086
      %v1088 = vrot.slane %v730, 1
      %v1089 = vrot.slane %v731, 1
      %v1090 = vsel %vm844, %v1088, %v1089
      %v1091 = vrot.slane %v996, 1
      %v1092 = vsel %vm844, %v1089, %v1091
      %v1093 = vrot.slane %v732, 1
      %v1094 = vrot.slane %v733, 1
      %v1095 = vsel %vm844, %v1093, %v1094
      %v1096 = vrot.slane %v997, 1
      %v1097 = vsel %vm844, %v1094, %v1096
      %v1098 = vrot.slane %v734, 1
      %v1099 = vrot.slane %v735, 1
      %v1100 = vsel %vm844, %v1098, %v1099
      %v1101 = vrot.slane %v998, 1
      %v1102 = vsel %vm844, %v1099, %v1101
      %v1103 = vrot.slane %v736, 1
      %v1104 = vrot.slane %v737, 1
      %v1105 = vsel %vm844, %v1103, %v1104
      %v1106 = vrot.slane %v999, 1
      %v1107 = vsel %vm844, %v1104, %v1106
      %v1108 = vrot.slane %v738, 1
      %v1109 = vrot.slane %v739, 1
      %v1110 = vsel %vm844, %v1108, %v1109
      %v1111 = vrot.slane %v1000, 1
      %v1112 = vsel %vm844, %v1109, %v1111
      %v1113 = vrot.slane %v740, 1
      %v1114 = vrot.slane %v741, 1
      %v1115 = vsel %vm844, %v1113, %v1114
      %v1116 = vrot.slane %v1001, 1
      %v1117 = vsel %vm844, %v1114, %v1116
      %v1118 = vrot.slane %v742, 1
      %v1119 = vrot.slane %v743, 1
      %v1120 = vsel %vm844, %v1118, %v1119
      %v1121 = vrot.slane %v1002, 1
      %v1122 = vsel %vm844, %v1119, %v1121
      %v1123 = vrot.slane %v744, 1
      %v1124 = vrot.slane %v745, 1
      %v1125 = vsel %vm844, %v1123, %v1124
      %v1126 = vrot.slane %v1003, 1
      %v1127 = vsel %vm844, %v1124, %v1126
      %v1128 = vrot.slane %v746, 1
      %v1129 = vrot.slane %v747, 1
      %v1130 = vsel %vm844, %v1128, %v1129
      %v1131 = vrot.slane %v1004, 1
      %v1132 = vsel %vm844, %v1129, %v1131
      %v1181 = vadd.f32 %v748, %v1055
      %v1182 = vadd.f32 %v749, %v1057
      %v1183 = vadd.f32 %v750, %v1056
      %v1184 = vadd.f32 %v751, %v1060
      %v1185 = vadd.f32 %v752, %v1062
      %v1186 = vadd.f32 %v753, %v1061
      %v1187 = vadd.f32 %v754, %v1065
      %v1188 = vadd.f32 %v755, %v1067
      %v1189 = vadd.f32 %v756, %v1066
      %v1190 = vadd.f32 %v757, %v1070
      %v1191 = vadd.f32 %v758, %v1072
      %v1192 = vadd.f32 %v759, %v1071
      %v1193 = vadd.f32 %v760, %v1075
      %v1194 = vadd.f32 %v761, %v1077
      %v1195 = vadd.f32 %v762, %v1076
      %v1196 = vadd.f32 %v763, %v1080
      %v1197 = vadd.f32 %v764, %v1082
      %v1198 = vadd.f32 %v765, %v1081
      %v1199 = vadd.f32 %v766, %v1085
      %v1200 = vadd.f32 %v767, %v1087
      %v1201 = vadd.f32 %v768, %v1086
      %v1202 = vadd.f32 %v769, %v1090
      %v1203 = vadd.f32 %v770, %v1092
      %v1204 = vadd.f32 %v771, %v1091
      %v1205 = vadd.f32 %v772, %v1095
      %v1206 = vadd.f32 %v773, %v1097
      %v1207 = vadd.f32 %v774, %v1096
      %v1208 = vadd.f32 %v775, %v1100
      %v1209 = vadd.f32 %v776, %v1102
      %v1210 = vadd.f32 %v777, %v1101
      %v1211 = vadd.f32 %v778, %v1105
      %v1212 = vadd.f32 %v779, %v1107
      %v1213 = vadd.f32 %v780, %v1106
      %v1214 = vadd.f32 %v781, %v1110
      %v1215 = vadd.f32 %v782, %v1112
      %v1216 = vadd.f32 %v783, %v1111
      %v1217 = vadd.f32 %v784, %v1115
      %v1218 = vadd.f32 %v785, %v1117
      %v1219 = vadd.f32 %v786, %v1116
      %v1220 = vadd.f32 %v787, %v1120
      %v1221 = vadd.f32 %v788, %v1122
      %v1222 = vadd.f32 %v789, %v1121
      %v1223 = vadd.f32 %v790, %v1125
      %v1224 = vadd.f32 %v791, %v1127
      %v1225 = vadd.f32 %v792, %v1126
      %v1226 = vadd.f32 %v793, %v1130
      %v1227 = vadd.f32 %v794, %v1132
      %v1228 = vadd.f32 %v795, %v1131
      %v1229 = vmul.f32 %v668, 0.25
      %v1230 = vmul.f32 %v669, 0.25
      %v1231 = vmul.f32 %v671, 0.25
      %v1232 = vmul.f32 %v672, 0.25
      %v1233 = vmul.f32 %v674, 0.25
      %v1234 = vmul.f32 %v675, 0.25
      %v1235 = vmul.f32 %v677, 0.25
      %v1236 = vmul.f32 %v678, 0.25
      %v1237 = vmul.f32 %v680, 0.25
      %v1238 = vmul.f32 %v681, 0.25
      %v1239 = vmul.f32 %v683, 0.25
      %v1240 = vmul.f32 %v684, 0.25
      %v1241 = vmul.f32 %v686, 0.25
      %v1242 = vmul.f32 %v687, 0.25
      %v1243 = vmul.f32 %v689, 0.25
      %v1244 = vmul.f32 %v690, 0.25
      %v1245 = vmul.f32 %v692, 0.25
      %v1246 = vmul.f32 %v693, 0.25
      %v1247 = vmul.f32 %v695, 0.25
      %v1248 = vmul.f32 %v696, 0.25
      %v1249 = vmul.f32 %v698, 0.25
      %v1250 = vmul.f32 %v699, 0.25
      %v1251 = vmul.f32 %v701, 0.25
      %v1252 = vmul.f32 %v702, 0.25
      %v1253 = vmul.f32 %v704, 0.25
      %v1254 = vmul.f32 %v705, 0.25
      %v1255 = vmul.f32 %v707, 0.25
      %v1256 = vmul.f32 %v708, 0.25
      %v1257 = vmul.f32 %v710, 0.25
      %v1258 = vmul.f32 %v711, 0.25
      %v1259 = vmul.f32 %v713, 0.25
      %v1260 = vmul.f32 %v714, 0.25
      %v1261 = vmul.f32 %v668, 0.75
      %v1262 = vmul.f32 %v669, 0.75
      %v1263 = vmul.f32 %v670, 0.75
      %v1264 = vmul.f32 %v671, 0.75
      %v1265 = vmul.f32 %v672, 0.75
      %v1266 = vmul.f32 %v673, 0.75
      %v1267 = vmul.f32 %v674, 0.75
      %v1268 = vmul.f32 %v675, 0.75
      %v1269 = vmul.f32 %v676, 0.75
      %v1270 = vmul.f32 %v677, 0.75
      %v1271 = vmul.f32 %v678, 0.75
      %v1272 = vmul.f32 %v679, 0.75
      %v1273 = vmul.f32 %v680, 0.75
      %v1274 = vmul.f32 %v681, 0.75
      %v1275 = vmul.f32 %v682, 0.75
      %v1276 = vmul.f32 %v683, 0.75
      %v1277 = vmul.f32 %v684, 0.75
      %v1278 = vmul.f32 %v685, 0.75
      %v1279 = vmul.f32 %v686, 0.75
      %v1280 = vmul.f32 %v687, 0.75
      %v1281 = vmul.f32 %v688, 0.75
      %v1282 = vmul.f32 %v689, 0.75
      %v1283 = vmul.f32 %v690, 0.75
      %v1284 = vmul.f32 %v691, 0.75
      %v1285 = vmul.f32 %v692, 0.75
      %v1286 = vmul.f32 %v693, 0.75
      %v1287 = vmul.f32 %v694, 0.75
      %v1288 = vmul.f32 %v695, 0.75
      %v1289 = vmul.f32 %v696, 0.75
      %v1290 = vmul.f32 %v697, 0.75
      %v1291 = vmul.f32 %v698, 0.75
      %v1292 = vmul.f32 %v699, 0.75
      %v1293 = vmul.f32 %v700, 0.75
      %v1294 = vmul.f32 %v701, 0.75
      %v1295 = vmul.f32 %v702, 0.75
      %v1296 = vmul.f32 %v703, 0.75
      %v1297 = vmul.f32 %v704, 0.75
      %v1298 = vmul.f32 %v705, 0.75
      %v1299 = vmul.f32 %v706, 0.75
      %v1300 = vmul.f32 %v707, 0.75
      %v1301 = vmul.f32 %v708, 0.75
      %v1302 = vmul.f32 %v709, 0.75
      %v1303 = vmul.f32 %v710, 0.75
      %v1304 = vmul.f32 %v711, 0.75
      %v1305 = vmul.f32 %v712, 0.75
      %v1306 = vmul.f32 %v713, 0.75
      %v1307 = vmul.f32 %v714, 0.75
      %v1308 = vmul.f32 %v715, 0.75
      %v1357 = vrot.slane %v1261, 1
      %v1358 = vrot.slane %v1262, 1
      %v1359 = vsel %vm844, %v1357, %v1358
      %v1360 = vrot.slane %v1263, 1
      %v1361 = vsel %vm844, %v1358, %v1360
      %v1362 = vrot.slane %v1264, 1
      %v1363 = vrot.slane %v1265, 1
      %v1364 = vsel %vm844, %v1362, %v1363
      %v1365 = vrot.slane %v1266, 1
      %v1366 = vsel %vm844, %v1363, %v1365
      %v1367 = vrot.slane %v1267, 1
      %v1368 = vrot.slane %v1268, 1
      %v1369 = vsel %vm844, %v1367, %v1368
      %v1370 = vrot.slane %v1269, 1
      %v1371 = vsel %vm844, %v1368, %v1370
      %v1372 = vrot.slane %v1270, 1
      %v1373 = vrot.slane %v1271, 1
      %v1374 = vsel %vm844, %v1372, %v1373
      %v1375 = vrot.slane %v1272, 1
      %v1376 = vsel %vm844, %v1373, %v1375
      %v1377 = vrot.slane %v1273, 1
      %v1378 = vrot.slane %v1274, 1
      %v1379 = vsel %vm844, %v1377, %v1378
      %v1380 = vrot.slane %v1275, 1
      %v1381 = vsel %vm844, %v1378, %v1380
      %v1382 = vrot.slane %v1276, 1
      %v1383 = vrot.slane %v1277, 1
      %v1384 = vsel %vm844, %v1382, %v1383
      %v1385 = vrot.slane %v1278, 1
      %v1386 = vsel %vm844, %v1383, %v1385
      %v1387 = vrot.slane %v1279, 1
      %v1388 = vrot.slane %v1280, 1
      %v1389 = vsel %vm844, %v1387, %v1388
      %v1390 = vrot.slane %v1281, 1
      %v1391 = vsel %vm844, %v1388, %v1390
      %v1392 = vrot.slane %v1282, 1
      %v1393 = vrot.slane %v1283, 1
      %v1394 = vsel %vm844, %v1392, %v1393
      %v1395 = vrot.slane %v1284, 1
      %v1396 = vsel %vm844, %v1393, %v1395
      %v1397 = vrot.slane %v1285, 1
      %v1398 = vrot.slane %v1286, 1
      %v1399 = vsel %vm844, %v1397, %v1398
      %v1400 = vrot.slane %v1287, 1
      %v1401 = vsel %vm844, %v1398, %v1400
      %v1402 = vrot.slane %v1288, 1
      %v1403 = vrot.slane %v1289, 1
      %v1404 = vsel %vm844, %v1402, %v1403
      %v1405 = vrot.slane %v1290, 1
      %v1406 = vsel %vm844, %v1403, %v1405
      %v1407 = vrot.slane %v1291, 1
      %v1408 = vrot.slane %v1292, 1
      %v1409 = vsel %vm844, %v1407, %v1408
      %v1410 = vrot.slane %v1293, 1
      %v1411 = vsel %vm844, %v1408, %v1410
      %v1412 = vrot.slane %v1294, 1
      %v1413 = vrot.slane %v1295, 1
      %v1414 = vsel %vm844, %v1412, %v1413
      %v1415 = vrot.slane %v1296, 1
      %v1416 = vsel %vm844, %v1413, %v1415
      %v1417 = vrot.slane %v1297, 1
      %v1418 = vrot.slane %v1298, 1
      %v1419 = vsel %vm844, %v1417, %v1418
      %v1420 = vrot.slane %v1299, 1
      %v1421 = vsel %vm844, %v1418, %v1420
      %v1422 = vrot.slane %v1300, 1
      %v1423 = vrot.slane %v1301, 1
      %v1424 = vsel %vm844, %v1422, %v1423
      %v1425 = vrot.slane %v1302, 1
      %v1426 = vsel %vm844, %v1423, %v1425
      %v1427 = vrot.slane %v1303, 1
      %v1428 = vrot.slane %v1304, 1
      %v1429 = vsel %vm844, %v1427, %v1428
      %v1430 = vrot.slane %v1305, 1
      %v1431 = vsel %vm844, %v1428, %v1430
      %v1432 = vrot.slane %v1306, 1
      %v1433 = vrot.slane %v1307, 1
      %v1434 = vsel %vm844, %v1432, %v1433
      %v1435 = vrot.slane %v1308, 1
      %v1436 = vsel %vm844, %v1433, %v1435
      %v1469 = vadd.f32 %v1229, %v1359
      %v1470 = vadd.f32 %v1230, %v1361
      %v1471 = vadd.f32 %v1231, %v1364
      %v1472 = vadd.f32 %v1232, %v1366
      %v1473 = vadd.f32 %v1233, %v1369
      %v1474 = vadd.f32 %v1234, %v1371
      %v1475 = vadd.f32 %v1235, %v1374
      %v1476 = vadd.f32 %v1236, %v1376
      %v1477 = vadd.f32 %v1237, %v1379
      %v1478 = vadd.f32 %v1238, %v1381
      %v1479 = vadd.f32 %v1239, %v1384
      %v1480 = vadd.f32 %v1240, %v1386
      %v1481 = vadd.f32 %v1241, %v1389
      %v1482 = vadd.f32 %v1242, %v1391
      %v1483 = vadd.f32 %v1243, %v1394
      %v1484 = vadd.f32 %v1244, %v1396
      %v1485 = vadd.f32 %v1245, %v1399
      %v1486 = vadd.f32 %v1246, %v1401
      %v1487 = vadd.f32 %v1247, %v1404
      %v1488 = vadd.f32 %v1248, %v1406
      %v1489 = vadd.f32 %v1249, %v1409
      %v1490 = vadd.f32 %v1250, %v1411
      %v1491 = vadd.f32 %v1251, %v1414
      %v1492 = vadd.f32 %v1252, %v1416
      %v1493 = vadd.f32 %v1253, %v1419
      %v1494 = vadd.f32 %v1254, %v1421
      %v1495 = vadd.f32 %v1255, %v1424
      %v1496 = vadd.f32 %v1256, %v1426
      %v1497 = vadd.f32 %v1257, %v1429
      %v1498 = vadd.f32 %v1258, %v1431
      %v1499 = vadd.f32 %v1259, %v1434
      %v1500 = vadd.f32 %v1260, %v1436
      %v1501 = vmul.f32 %v670, 0.25
      %v1502 = vmul.f32 %v673, 0.25
      %v1503 = vmul.f32 %v676, 0.25
      %v1504 = vmul.f32 %v679, 0.25
      %v1505 = vmul.f32 %v682, 0.25
      %v1506 = vmul.f32 %v685, 0.25
      %v1507 = vmul.f32 %v688, 0.25
      %v1508 = vmul.f32 %v691, 0.25
      %v1509 = vmul.f32 %v694, 0.25
      %v1510 = vmul.f32 %v697, 0.25
      %v1511 = vmul.f32 %v700, 0.25
      %v1512 = vmul.f32 %v703, 0.25
      %v1513 = vmul.f32 %v706, 0.25
      %v1514 = vmul.f32 %v709, 0.25
      %v1515 = vmul.f32 %v712, 0.25
      %v1516 = vmul.f32 %v715, 0.25
      %v1565 = vrot.slane %v1229, 1
      %v1566 = vrot.slane %v1230, 1
      %v1567 = vsel %vm844, %v1565, %v1566
      %v1568 = vrot.slane %v1501, 1
      %v1569 = vsel %vm844, %v1566, %v1568
      %v1570 = vrot.slane %v1231, 1
      %v1571 = vrot.slane %v1232, 1
      %v1572 = vsel %vm844, %v1570, %v1571
      %v1573 = vrot.slane %v1502, 1
      %v1574 = vsel %vm844, %v1571, %v1573
      %v1575 = vrot.slane %v1233, 1
      %v1576 = vrot.slane %v1234, 1
      %v1577 = vsel %vm844, %v1575, %v1576
      %v1578 = vrot.slane %v1503, 1
      %v1579 = vsel %vm844, %v1576, %v1578
      %v1580 = vrot.slane %v1235, 1
      %v1581 = vrot.slane %v1236, 1
      %v1582 = vsel %vm844, %v1580, %v1581
      %v1583 = vrot.slane %v1504, 1
      %v1584 = vsel %vm844, %v1581, %v1583
      %v1585 = vrot.slane %v1237, 1
      %v1586 = vrot.slane %v1238, 1
      %v1587 = vsel %vm844, %v1585, %v1586
      %v1588 = vrot.slane %v1505, 1
      %v1589 = vsel %vm844, %v1586, %v1588
      %v1590 = vrot.slane %v1239, 1
      %v1591 = vrot.slane %v1240, 1
      %v1592 = vsel %vm844, %v1590, %v1591
      %v1593 = vrot.slane %v1506, 1
      %v1594 = vsel %vm844, %v1591, %v1593
      %v1595 = vrot.slane %v1241, 1
      %v1596 = vrot.slane %v1242, 1
      %v1597 = vsel %vm844, %v1595, %v1596
      %v1598 = vrot.slane %v1507, 1
      %v1599 = vsel %vm844, %v1596, %v1598
      %v1600 = vrot.slane %v1243, 1
      %v1601 = vrot.slane %v1244, 1
      %v1602 = vsel %vm844, %v1600, %v1601
      %v1603 = vrot.slane %v1508, 1
      %v1604 = vsel %vm844, %v1601, %v1603
      %v1605 = vrot.slane %v1245, 1
      %v1606 = vrot.slane %v1246, 1
      %v1607 = vsel %vm844, %v1605, %v1606
      %v1608 = vrot.slane %v1509, 1
      %v1609 = vsel %vm844, %v1606, %v1608
      %v1610 = vrot.slane %v1247, 1
      %v1611 = vrot.slane %v1248, 1
      %v1612 = vsel %vm844, %v1610, %v1611
      %v1613 = vrot.slane %v1510, 1
      %v1614 = vsel %vm844, %v1611, %v1613
      %v1615 = vrot.slane %v1249, 1
      %v1616 = vrot.slane %v1250, 1
      %v1617 = vsel %vm844, %v1615, %v1616
      %v1618 = vrot.slane %v1511, 1
      %v1619 = vsel %vm844, %v1616, %v1618
      %v1620 = vrot.slane %v1251, 1
      %v1621 = vrot.slane %v1252, 1
      %v1622 = vsel %vm844, %v1620, %v1621
      %v1623 = vrot.slane %v1512, 1
      %v1624 = vsel %vm844, %v1621, %v1623
      %v1625 = vrot.slane %v1253, 1
      %v1626 = vrot.slane %v1254, 1
      %v1627 = vsel %vm844, %v1625, %v1626
      %v1628 = vrot.slane %v1513, 1
      %v1629 = vsel %vm844, %v1626, %v1628
      %v1630 = vrot.slane %v1255, 1
      %v1631 = vrot.slane %v1256, 1
      %v1632 = vsel %vm844, %v1630, %v1631
      %v1633 = vrot.slane %v1514, 1
      %v1634 = vsel %vm844, %v1631, %v1633
      %v1635 = vrot.slane %v1257, 1
      %v1636 = vrot.slane %v1258, 1
      %v1637 = vsel %vm844, %v1635, %v1636
      %v1638 = vrot.slane %v1515, 1
      %v1639 = vsel %vm844, %v1636, %v1638
      %v1640 = vrot.slane %v1259, 1
      %v1641 = vrot.slane %v1260, 1
      %v1642 = vsel %vm844, %v1640, %v1641
      %v1643 = vrot.slane %v1516, 1
      %v1644 = vsel %vm844, %v1641, %v1643
      %v1693 = vadd.f32 %v1261, %v1567
      %v1694 = vadd.f32 %v1262, %v1569
      %v1695 = vadd.f32 %v1263, %v1568
      %v1696 = vadd.f32 %v1264, %v1572
      %v1697 = vadd.f32 %v1265, %v1574
      %v1698 = vadd.f32 %v1266, %v1573
      %v1699 = vadd.f32 %v1267, %v1577
      %v1700 = vadd.f32 %v1268, %v1579
      %v1701 = vadd.f32 %v1269, %v1578
      %v1702 = vadd.f32 %v1270, %v1582
      %v1703 = vadd.f32 %v1271, %v1584
      %v1704 = vadd.f32 %v1272, %v1583
      %v1705 = vadd.f32 %v1273, %v1587
      %v1706 = vadd.f32 %v1274, %v1589
      %v1707 = vadd.f32 %v1275, %v1588
      %v1708 = vadd.f32 %v1276, %v1592
      %v1709 = vadd.f32 %v1277, %v1594
      %v1710 = vadd.f32 %v1278, %v1593
      %v1711 = vadd.f32 %v1279, %v1597
      %v1712 = vadd.f32 %v1280, %v1599
      %v1713 = vadd.f32 %v1281, %v1598
      %v1714 = vadd.f32 %v1282, %v1602
      %v1715 = vadd.f32 %v1283, %v1604
      %v1716 = vadd.f32 %v1284, %v1603
      %v1717 = vadd.f32 %v1285, %v1607
      %v1718 = vadd.f32 %v1286, %v1609
      %v1719 = vadd.f32 %v1287, %v1608
      %v1720 = vadd.f32 %v1288, %v1612
      %v1721 = vadd.f32 %v1289, %v1614
      %v1722 = vadd.f32 %v1290, %v1613
      %v1723 = vadd.f32 %v1291, %v1617
      %v1724 = vadd.f32 %v1292, %v1619
      %v1725 = vadd.f32 %v1293, %v1618
      %v1726 = vadd.f32 %v1294, %v1622
      %v1727 = vadd.f32 %v1295, %v1624
      %v1728 = vadd.f32 %v1296, %v1623
      %v1729 = vadd.f32 %v1297, %v1627
      %v1730 = vadd.f32 %v1298, %v1629
      %v1731 = vadd.f32 %v1299, %v1628
      %v1732 = vadd.f32 %v1300, %v1632
      %v1733 = vadd.f32 %v1301, %v1634
      %v1734 = vadd.f32 %v1302, %v1633
      %v1735 = vadd.f32 %v1303, %v1637
      %v1736 = vadd.f32 %v1304, %v1639
      %v1737 = vadd.f32 %v1305, %v1638
      %v1738 = vadd.f32 %v1306, %v1642
      %v1739 = vadd.f32 %v1307, %v1644
      %v1740 = vadd.f32 %v1308, %v1643
      %v1741 = vld [vmem:[%s4] sm:$0xff]
      %v1742 = vld [vmem:[%s4 + $0x8] sm:$0xff]
      %v1743 = vld [vmem:[%s4 + $0x10] sm:$0xff]
      %v1744 = vld [vmem:[%s4 + $0x18] sm:$0xff]
      %v1745 = vld [vmem:[%s4 + $0x20] sm:$0xff]
      %v1746 = vld [vmem:[%s4 + $0x28] sm:$0xff]
      %v1747 = vld [vmem:[%s4 + $0x30] sm:$0xff]
      %v1748 = vld [vmem:[%s4 + $0x38] sm:$0xff]
      %v1749 = vld [vmem:[%s4 + $0x40] sm:$0xff]
      %v1750 = vld [vmem:[%s4 + $0x48] sm:$0xff]
      %v1751 = vld [vmem:[%s4 + $0x50] sm:$0xff]
      %v1752 = vld [vmem:[%s4 + $0x58] sm:$0xff]
      %v1753 = vld [vmem:[%s4 + $0x60] sm:$0xff]
      %v1754 = vld [vmem:[%s4 + $0x68] sm:$0xff]
      %v1755 = vld [vmem:[%s4 + $0x70] sm:$0xff]
      %v1756 = vld [vmem:[%s4 + $0x78] sm:$0xff]
      %v1757 = vld [vmem:[%s4 + $0x80] sm:$0xff]
      %v1758 = vld [vmem:[%s4 + $0x88] sm:$0xff]
      %v1759 = vld [vmem:[%s4 + $0x90] sm:$0xff]
      %v1760 = vld [vmem:[%s4 + $0x98] sm:$0xff]
      %v1761 = vld [vmem:[%s4 + $0xa0] sm:$0xff]
      %v1762 = vld [vmem:[%s4 + $0xa8] sm:$0xff]
      %v1763 = vld [vmem:[%s4 + $0xb0] sm:$0xff]
      %v1764 = vld [vmem:[%s4 + $0xb8] sm:$0xff]
      %v1765 = vld [vmem:[%s4 + $0xc0] sm:$0xff]
      %v1766 = vld [vmem:[%s4 + $0xc8] sm:$0xff]
      %v1767 = vld [vmem:[%s4 + $0xd0] sm:$0xff]
      %v1768 = vld [vmem:[%s4 + $0xd8] sm:$0xff]
      %v1769 = vld [vmem:[%s4 + $0xe0] sm:$0xff]
      %v1770 = vld [vmem:[%s4 + $0xe8] sm:$0xff]
      %v1771 = vld [vmem:[%s4 + $0xf0] sm:$0xff]
      %v1772 = vld [vmem:[%s4 + $0xf8] sm:$0xff]
      %v1821 = vrot.slane %v1181, 1
      %v1822 = vrot.slane %v1182, 1
      %v1823 = vsel %vm844, %v1821, %v1822
      %v1824 = vrot.slane %v1183, 1
      %v1825 = vsel %vm844, %v1822, %v1824
      %v1826 = vrot.slane %v1184, 1
      %v1827 = vrot.slane %v1185, 1
      %v1828 = vsel %vm844, %v1826, %v1827
      %v1829 = vrot.slane %v1186, 1
      %v1830 = vsel %vm844, %v1827, %v1829
      %v1831 = vrot.slane %v1187, 1
      %v1832 = vrot.slane %v1188, 1
      %v1833 = vsel %vm844, %v1831, %v1832
      %v1834 = vrot.slane %v1189, 1
      %v1835 = vsel %vm844, %v1832, %v1834
      %v1836 = vrot.slane %v1190, 1
      %v1837 = vrot.slane %v1191, 1
      %v1838 = vsel %vm844, %v1836, %v1837
      %v1839 = vrot.slane %v1192, 1
      %v1840 = vsel %vm844, %v1837, %v1839
      %v1841 = vrot.slane %v1193, 1
      %v1842 = vrot.slane %v1194, 1
      %v1843 = vsel %vm844, %v1841, %v1842
      %v1844 = vrot.slane %v1195, 1
      %v1845 = vsel %vm844, %v1842, %v1844
      %v1846 = vrot.slane %v1196, 1
      %v1847 = vrot.slane %v1197, 1
      %v1848 = vsel %vm844, %v1846, %v1847
      %v1849 = vrot.slane %v1198, 1
      %v1850 = vsel %vm844, %v1847, %v1849
      %v1851 = vrot.slane %v1199, 1
      %v1852 = vrot.slane %v1200, 1
      %v1853 = vsel %vm844, %v1851, %v1852
      %v1854 = vrot.slane %v1201, 1
      %v1855 = vsel %vm844, %v1852, %v1854
      %v1856 = vrot.slane %v1202, 1
      %v1857 = vrot.slane %v1203, 1
      %v1858 = vsel %vm844, %v1856, %v1857
      %v1859 = vrot.slane %v1204, 1
      %v1860 = vsel %vm844, %v1857, %v1859
      %v1861 = vrot.slane %v1205, 1
      %v1862 = vrot.slane %v1206, 1
      %v1863 = vsel %vm844, %v1861, %v1862
      %v1864 = vrot.slane %v1207, 1
      %v1865 = vsel %vm844, %v1862, %v1864
      %v1866 = vrot.slane %v1208, 1
      %v1867 = vrot.slane %v1209, 1
      %v1868 = vsel %vm844, %v1866, %v1867
      %v1869 = vrot.slane %v1210, 1
      %v1870 = vsel %vm844, %v1867, %v1869
      %v1871 = vrot.slane %v1211, 1
      %v1872 = vrot.slane %v1212, 1
      %v1873 = vsel %vm844, %v1871, %v1872
      %v1874 = vrot.slane %v1213, 1
      %v1875 = vsel %vm844, %v1872, %v1874
      %v1876 = vrot.slane %v1214, 1
      %v1877 = vrot.slane %v1215, 1
      %v1878 = vsel %vm844, %v1876, %v1877
      %v1879 = vrot.slane %v1216, 1
      %v1880 = vsel %vm844, %v1877, %v1879
      %v1881 = vrot.slane %v1217, 1
      %v1882 = vrot.slane %v1218, 1
      %v1883 = vsel %vm844, %v1881, %v1882
      %v1884 = vrot.slane %v1219, 1
      %v1885 = vsel %vm844, %v1882, %v1884
      %v1886 = vrot.slane %v1220, 1
      %v1887 = vrot.slane %v1221, 1
      %v1888 = vsel %vm844, %v1886, %v1887
      %v1889 = vrot.slane %v1222, 1
      %v1890 = vsel %vm844, %v1887, %v1889
      %v1891 = vrot.slane %v1223, 1
      %v1892 = vrot.slane %v1224, 1
      %v1893 = vsel %vm844, %v1891, %v1892
      %v1894 = vrot.slane %v1225, 1
      %v1895 = vsel %vm844, %v1892, %v1894
      %v1896 = vrot.slane %v1226, 1
      %v1897 = vrot.slane %v1227, 1
      %v1898 = vsel %vm844, %v1896, %v1897
      %v1899 = vrot.slane %v1228, 1
      %v1900 = vsel %vm844, %v1897, %v1899
      %1901 = vrot.lane.b32.xlu0 %v1823, 32
      %v1902 = vpop.permute.xlu0 %1901
      %1903 = vrot.lane.b32.xlu0 %v1825, 32
      %v1904 = vpop.permute.xlu0 %1903
      %1905 = vrot.lane.b32.xlu0 %v1828, 32
      %v1906 = vpop.permute.xlu0 %1905
      %1907 = vrot.lane.b32.xlu0 %v1830, 32
      %v1908 = vpop.permute.xlu0 %1907
      %1909 = vrot.lane.b32.xlu0 %v1833, 32
      %v1910 = vpop.permute.xlu0 %1909
      %1911 = vrot.lane.b32.xlu0 %v1835, 32
      %v1912 = vpop.permute.xlu0 %1911
      %1913 = vrot.lane.b32.xlu0 %v1838, 32
      %v1914 = vpop.permute.xlu0 %1913
      %1915 = vrot.lane.b32.xlu0 %v1840, 32
      %v1916 = vpop.permute.xlu0 %1915
      %1917 = vrot.lane.b32.xlu0 %v1843, 32
      %v1918 = vpop.permute.xlu0 %1917
      %1919 = vrot.lane.b32.xlu0 %v1845, 32
      %v1920 = vpop.permute.xlu0 %1919
      %1921 = vrot.lane.b32.xlu0 %v1848, 32
      %v1922 = vpop.permute.xlu0 %1921
      %1923 = vrot.lane.b32.xlu0 %v1850, 32
      %v1924 = vpop.permute.xlu0 %1923
      %1925 = vrot.lane.b32.xlu0 %v1853, 32
      %v1926 = vpop.permute.xlu0 %1925
      %1927 = vrot.lane.b32.xlu0 %v1855, 32
      %v1928 = vpop.permute.xlu0 %1927
      %1929 = vrot.lane.b32.xlu0 %v1858, 32
      %v1930 = vpop.permute.xlu0 %1929
      %1931 = vrot.lane.b32.xlu0 %v1860, 32
      %v1932 = vpop.permute.xlu0 %1931
      %1933 = vrot.lane.b32.xlu0 %v1863, 32
      %v1934 = vpop.permute.xlu0 %1933
      %1935 = vrot.lane.b32.xlu0 %v1865, 32
      %v1936 = vpop.permute.xlu0 %1935
      %1937 = vrot.lane.b32.xlu0 %v1868, 32
      %v1938 = vpop.permute.xlu0 %1937
      %1939 = vrot.lane.b32.xlu0 %v1870, 32
      %v1940 = vpop.permute.xlu0 %1939
      %1941 = vrot.lane.b32.xlu0 %v1873, 32
      %v1942 = vpop.permute.xlu0 %1941
      %1943 = vrot.lane.b32.xlu0 %v1875, 32
      %v1944 = vpop.permute.xlu0 %1943
      %1945 = vrot.lane.b32.xlu0 %v1878, 32
      %v1946 = vpop.permute.xlu0 %1945
      %1947 = vrot.lane.b32.xlu0 %v1880, 32
      %v1948 = vpop.permute.xlu0 %1947
      %1949 = vrot.lane.b32.xlu0 %v1883, 32
      %v1950 = vpop.permute.xlu0 %1949
      %1951 = vrot.lane.b32.xlu0 %v1885, 32
      %v1952 = vpop.permute.xlu0 %1951
      %1953 = vrot.lane.b32.xlu0 %v1888, 32
      %v1954 = vpop.permute.xlu0 %1953
      %1955 = vrot.lane.b32.xlu0 %v1890, 32
      %v1956 = vpop.permute.xlu0 %1955
      %1957 = vrot.lane.b32.xlu0 %v1893, 32
      %v1958 = vpop.permute.xlu0 %1957
      %1959 = vrot.lane.b32.xlu0 %v1895, 32
      %v1960 = vpop.permute.xlu0 %1959
      %1961 = vrot.lane.b32.xlu0 %v1898, 32
      %v1962 = vpop.permute.xlu0 %1961
      %1963 = vrot.lane.b32.xlu0 %v1900, 32
      %v1964 = vpop.permute.xlu0 %1963
      %2029 = vrot.lane.b32.xlu0 %v1469, 64
      %v2030 = vpop.permute.xlu0 %2029
      %2031 = vrot.lane.b32.xlu0 %v1470, 64
      %v2032 = vpop.permute.xlu0 %2031
      %2033 = vrot.lane.b32.xlu0 %v1471, 64
      %v2034 = vpop.permute.xlu0 %2033
      %2035 = vrot.lane.b32.xlu0 %v1472, 64
      %v2036 = vpop.permute.xlu0 %2035
      %2037 = vrot.lane.b32.xlu0 %v1473, 64
      %v2038 = vpop.permute.xlu0 %2037
      %2039 = vrot.lane.b32.xlu0 %v1474, 64
      %v2040 = vpop.permute.xlu0 %2039
      %2041 = vrot.lane.b32.xlu0 %v1475, 64
      %v2042 = vpop.permute.xlu0 %2041
      %2043 = vrot.lane.b32.xlu0 %v1476, 64
      %v2044 = vpop.permute.xlu0 %2043
      %2045 = vrot.lane.b32.xlu0 %v1477, 64
      %v2046 = vpop.permute.xlu0 %2045
      %2047 = vrot.lane.b32.xlu0 %v1478, 64
      %v2048 = vpop.permute.xlu0 %2047
      %2049 = vrot.lane.b32.xlu0 %v1479, 64
      %v2050 = vpop.permute.xlu0 %2049
      %2051 = vrot.lane.b32.xlu0 %v1480, 64
      %v2052 = vpop.permute.xlu0 %2051
      %2053 = vrot.lane.b32.xlu0 %v1481, 64
      %v2054 = vpop.permute.xlu0 %2053
      %2055 = vrot.lane.b32.xlu0 %v1482, 64
      %v2056 = vpop.permute.xlu0 %2055
      %2057 = vrot.lane.b32.xlu0 %v1483, 64
      %v2058 = vpop.permute.xlu0 %2057
      %2059 = vrot.lane.b32.xlu0 %v1484, 64
      %v2060 = vpop.permute.xlu0 %2059
      %2061 = vrot.lane.b32.xlu0 %v1485, 64
      %v2062 = vpop.permute.xlu0 %2061
      %2063 = vrot.lane.b32.xlu0 %v1486, 64
      %v2064 = vpop.permute.xlu0 %2063
      %2065 = vrot.lane.b32.xlu0 %v1487, 64
      %v2066 = vpop.permute.xlu0 %2065
      %2067 = vrot.lane.b32.xlu0 %v1488, 64
      %v2068 = vpop.permute.xlu0 %2067
      %2069 = vrot.lane.b32.xlu0 %v1489, 64
      %v2070 = vpop.permute.xlu0 %2069
      %2071 = vrot.lane.b32.xlu0 %v1490, 64
      %v2072 = vpop.permute.xlu0 %2071
      %2073 = vrot.lane.b32.xlu0 %v1491, 64
      %v2074 = vpop.permute.xlu0 %2073
      %2075 = vrot.lane.b32.xlu0 %v1492, 64
      %v2076 = vpop.permute.xlu0 %2075
      %2077 = vrot.lane.b32.xlu0 %v1493, 64
      %v2078 = vpop.permute.xlu0 %2077
      %2079 = vrot.lane.b32.xlu0 %v1494, 64
      %v2080 = vpop.permute.xlu0 %2079
      %2081 = vrot.lane.b32.xlu0 %v1495, 64
      %v2082 = vpop.permute.xlu0 %2081
      %2083 = vrot.lane.b32.xlu0 %v1496, 64
      %v2084 = vpop.permute.xlu0 %2083
      %2085 = vrot.lane.b32.xlu0 %v1497, 64
      %v2086 = vpop.permute.xlu0 %2085
      %2087 = vrot.lane.b32.xlu0 %v1498, 64
      %v2088 = vpop.permute.xlu0 %2087
      %2089 = vrot.lane.b32.xlu0 %v1499, 64
      %v2090 = vpop.permute.xlu0 %2089
      %2091 = vrot.lane.b32.xlu0 %v1500, 64
      %v2092 = vpop.permute.xlu0 %2091
      %v2173 = vrot.slane %v1693, 1
      %v2174 = vrot.slane %v1694, 1
      %v2175 = vsel %vm844, %v2173, %v2174
      %v2176 = vrot.slane %v1695, 1
      %v2177 = vsel %vm844, %v2174, %v2176
      %v2178 = vrot.slane %v1696, 1
      %v2179 = vrot.slane %v1697, 1
      %v2180 = vsel %vm844, %v2178, %v2179
      %v2181 = vrot.slane %v1698, 1
      %v2182 = vsel %vm844, %v2179, %v2181
      %v2183 = vrot.slane %v1699, 1
      %v2184 = vrot.slane %v1700, 1
      %v2185 = vsel %vm844, %v2183, %v2184
      %v2186 = vrot.slane %v1701, 1
      %v2187 = vsel %vm844, %v2184, %v2186
      %v2188 = vrot.slane %v1702, 1
      %v2189 = vrot.slane %v1703, 1
      %v2190 = vsel %vm844, %v2188, %v2189
      %v2191 = vrot.slane %v1704, 1
      %v2192 = vsel %vm844, %v2189, %v2191
      %v2193 = vrot.slane %v1705, 1
      %v2194 = vrot.slane %v1706, 1
      %v2195 = vsel %vm844, %v2193, %v2194
      %v2196 = vrot.slane %v1707, 1
      %v2197 = vsel %vm844, %v2194, %v2196
      %v2198 = vrot.slane %v1708, 1
      %v2199 = vrot.slane %v1709, 1
      %v2200 = vsel %vm844, %v2198, %v2199
      %v2201 = vrot.slane %v1710, 1
      %v2202 = vsel %vm844, %v2199, %v2201
      %v2203 = vrot.slane %v1711, 1
      %v2204 = vrot.slane %v1712, 1
      %v2205 = vsel %vm844, %v2203, %v2204
      %v2206 = vrot.slane %v1713, 1
      %v2207 = vsel %vm844, %v2204, %v2206
      %v2208 = vrot.slane %v1714, 1
      %v2209 = vrot.slane %v1715, 1
      %v2210 = vsel %vm844, %v2208, %v2209
      %v2211 = vrot.slane %v1716, 1
      %v2212 = vsel %vm844, %v2209, %v2211
      %v2213 = vrot.slane %v1717, 1
      %v2214 = vrot.slane %v1718, 1
      %v2215 = vsel %vm844, %v2213, %v2214
      %v2216 = vrot.slane %v1719, 1
      %v2217 = vsel %vm844, %v2214, %v2216
      %v2218 = vrot.slane %v1720, 1
      %v2219 = vrot.slane %v1721, 1
      %v2220 = vsel %vm844, %v2218, %v2219
      %v2221 = vrot.slane %v1722, 1
      %v2222 = vsel %vm844, %v2219, %v2221
      %v2223 = vrot.slane %v1723, 1
      %v2224 = vrot.slane %v1724, 1
      %v2225 = vsel %vm844, %v2223, %v2224
      %v2226 = vrot.slane %v1725, 1
      %v2227 = vsel %vm844, %v2224, %v2226
      %v2228 = vrot.slane %v1726, 1
      %v2229 = vrot.slane %v1727, 1
      %v2230 = vsel %vm844, %v2228, %v2229
      %v2231 = vrot.slane %v1728, 1
      %v2232 = vsel %vm844, %v2229, %v2231
      %v2233 = vrot.slane %v1729, 1
      %v2234 = vrot.slane %v1730, 1
      %v2235 = vsel %vm844, %v2233, %v2234
      %v2236 = vrot.slane %v1731, 1
      %v2237 = vsel %vm844, %v2234, %v2236
      %v2238 = vrot.slane %v1732, 1
      %v2239 = vrot.slane %v1733, 1
      %v2240 = vsel %vm844, %v2238, %v2239
      %v2241 = vrot.slane %v1734, 1
      %v2242 = vsel %vm844, %v2239, %v2241
      %v2243 = vrot.slane %v1735, 1
      %v2244 = vrot.slane %v1736, 1
      %v2245 = vsel %vm844, %v2243, %v2244
      %v2246 = vrot.slane %v1737, 1
      %v2247 = vsel %vm844, %v2244, %v2246
      %v2248 = vrot.slane %v1738, 1
      %v2249 = vrot.slane %v1739, 1
      %v2250 = vsel %vm844, %v2248, %v2249
      %v2251 = vrot.slane %v1740, 1
      %v2252 = vsel %vm844, %v2249, %v2251
      %2253 = vrot.lane.b32.xlu0 %v2175, 96
      %v2254 = vpop.permute.xlu0 %2253
      %2255 = vrot.lane.b32.xlu0 %v2177, 96
      %v2256 = vpop.permute.xlu0 %2255
      %2257 = vrot.lane.b32.xlu0 %v2180, 96
      %v2258 = vpop.permute.xlu0 %2257
      %2259 = vrot.lane.b32.xlu0 %v2182, 96
      %v2260 = vpop.permute.xlu0 %2259
      %2261 = vrot.lane.b32.xlu0 %v2185, 96
      %v2262 = vpop.permute.xlu0 %2261
      %2263 = vrot.lane.b32.xlu0 %v2187, 96
      %v2264 = vpop.permute.xlu0 %2263
      %2265 = vrot.lane.b32.xlu0 %v2190, 96
      %v2266 = vpop.permute.xlu0 %2265
      %2267 = vrot.lane.b32.xlu0 %v2192, 96
      %v2268 = vpop.permute.xlu0 %2267
      %2269 = vrot.lane.b32.xlu0 %v2195, 96
      %v2270 = vpop.permute.xlu0 %2269
      %2271 = vrot.lane.b32.xlu0 %v2197, 96
      %v2272 = vpop.permute.xlu0 %2271
      %2273 = vrot.lane.b32.xlu0 %v2200, 96
      %v2274 = vpop.permute.xlu0 %2273
      %2275 = vrot.lane.b32.xlu0 %v2202, 96
      %v2276 = vpop.permute.xlu0 %2275
      %2277 = vrot.lane.b32.xlu0 %v2205, 96
      %v2278 = vpop.permute.xlu0 %2277
      %2279 = vrot.lane.b32.xlu0 %v2207, 96
      %v2280 = vpop.permute.xlu0 %2279
      %2281 = vrot.lane.b32.xlu0 %v2210, 96
      %v2282 = vpop.permute.xlu0 %2281
      %2283 = vrot.lane.b32.xlu0 %v2212, 96
      %v2284 = vpop.permute.xlu0 %2283
      %2285 = vrot.lane.b32.xlu0 %v2215, 96
      %v2286 = vpop.permute.xlu0 %2285
      %2287 = vrot.lane.b32.xlu0 %v2217, 96
      %v2288 = vpop.permute.xlu0 %2287
      %2289 = vrot.lane.b32.xlu0 %v2220, 96
      %v2290 = vpop.permute.xlu0 %2289
      %2291 = vrot.lane.b32.xlu0 %v2222, 96
      %v2292 = vpop.permute.xlu0 %2291
      %2293 = vrot.lane.b32.xlu0 %v2225, 96
      %v2294 = vpop.permute.xlu0 %2293
      %2295 = vrot.lane.b32.xlu0 %v2227, 96
      %v2296 = vpop.permute.xlu0 %2295
      %2297 = vrot.lane.b32.xlu0 %v2230, 96
      %v2298 = vpop.permute.xlu0 %2297
      %2299 = vrot.lane.b32.xlu0 %v2232, 96
      %v2300 = vpop.permute.xlu0 %2299
      %2301 = vrot.lane.b32.xlu0 %v2235, 96
      %v2302 = vpop.permute.xlu0 %2301
      %2303 = vrot.lane.b32.xlu0 %v2237, 96
      %v2304 = vpop.permute.xlu0 %2303
      %2305 = vrot.lane.b32.xlu0 %v2240, 96
      %v2306 = vpop.permute.xlu0 %2305
      %2307 = vrot.lane.b32.xlu0 %v2242, 96
      %v2308 = vpop.permute.xlu0 %2307
      %2309 = vrot.lane.b32.xlu0 %v2245, 96
      %v2310 = vpop.permute.xlu0 %2309
      %2311 = vrot.lane.b32.xlu0 %v2247, 96
      %v2312 = vpop.permute.xlu0 %2311
      %2313 = vrot.lane.b32.xlu0 %v2250, 96
      %v2314 = vpop.permute.xlu0 %2313
      %2315 = vrot.lane.b32.xlu0 %v2252, 96
      %v2316 = vpop.permute.xlu0 %2315
      %vm2349 = vcmask 261120
      %v2350 = vsel %vm2349, %v957, %v1902
      %v2351 = vsel %vm2349, %v958, %v1904
      %v2352 = vsel %vm2349, %v959, %v1906
      %v2353 = vsel %vm2349, %v960, %v1908
      %v2354 = vsel %vm2349, %v961, %v1910
      %v2355 = vsel %vm2349, %v962, %v1912
      %v2356 = vsel %vm2349, %v963, %v1914
      %v2357 = vsel %vm2349, %v964, %v1916
      %v2358 = vsel %vm2349, %v965, %v1918
      %v2359 = vsel %vm2349, %v966, %v1920
      %v2360 = vsel %vm2349, %v967, %v1922
      %v2361 = vsel %vm2349, %v968, %v1924
      %v2362 = vsel %vm2349, %v969, %v1926
      %v2363 = vsel %vm2349, %v970, %v1928
      %v2364 = vsel %vm2349, %v971, %v1930
      %v2365 = vsel %vm2349, %v972, %v1932
      %v2366 = vsel %vm2349, %v973, %v1934
      %v2367 = vsel %vm2349, %v974, %v1936
      %v2368 = vsel %vm2349, %v975, %v1938
      %v2369 = vsel %vm2349, %v976, %v1940
      %v2370 = vsel %vm2349, %v977, %v1942
      %v2371 = vsel %vm2349, %v978, %v1944
      %v2372 = vsel %vm2349, %v979, %v1946
      %v2373 = vsel %vm2349, %v980, %v1948
      %v2374 = vsel %vm2349, %v981, %v1950
      %v2375 = vsel %vm2349, %v982, %v1952
      %v2376 = vsel %vm2349, %v983, %v1954
      %v2377 = vsel %vm2349, %v984, %v1956
      %v2378 = vsel %vm2349, %v985, %v1958
      %v2379 = vsel %vm2349, %v986, %v1960
      %v2380 = vsel %vm2349, %v987, %v1962
      %v2381 = vsel %vm2349, %v988, %v1964
      %vm2382 = vcmask 523264
      %v2383 = vsel %vm2382, %v2350, %v2030
      %v2384 = vsel %vm2382, %v2351, %v2032
      %v2385 = vsel %vm2382, %v2352, %v2034
      %v2386 = vsel %vm2382, %v2353, %v2036
      %v2387 = vsel %vm2382, %v2354, %v2038
      %v2388 = vsel %vm2382, %v2355, %v2040
      %v2389 = vsel %vm2382, %v2356, %v2042
      %v2390 = vsel %vm2382, %v2357, %v2044
      %v2391 = vsel %vm2382, %v2358, %v2046
      %v2392 = vsel %vm2382, %v2359, %v2048
      %v2393 = vsel %vm2382, %v2360, %v2050
      %v2394 = vsel %vm2382, %v2361, %v2052
      %v2395 = vsel %vm2382, %v2362, %v2054
      %v2396 = vsel %vm2382, %v2363, %v2056
      %v2397 = vsel %vm2382, %v2364, %v2058
      %v2398 = vsel %vm2382, %v2365, %v2060
      %v2399 = vsel %vm2382, %v2366, %v2062
      %v2400 = vsel %vm2382, %v2367, %v2064
      %v2401 = vsel %vm2382, %v2368, %v2066
      %v2402 = vsel %vm2382, %v2369, %v2068
      %v2403 = vsel %vm2382, %v2370, %v2070
      %v2404 = vsel %vm2382, %v2371, %v2072
      %v2405 = vsel %vm2382, %v2372, %v2074
      %v2406 = vsel %vm2382, %v2373, %v2076
      %v2407 = vsel %vm2382, %v2374, %v2078
      %v2408 = vsel %vm2382, %v2375, %v2080
      %v2409 = vsel %vm2382, %v2376, %v2082
      %v2410 = vsel %vm2382, %v2377, %v2084
      %v2411 = vsel %vm2382, %v2378, %v2086
      %v2412 = vsel %vm2382, %v2379, %v2088
      %v2413 = vsel %vm2382, %v2380, %v2090
      %v2414 = vsel %vm2382, %v2381, %v2092
      %vm2415 = vcmask 785408
      %v2416 = vsel %vm2415, %v2383, %v2254
      %v2417 = vsel %vm2415, %v2384, %v2256
      %v2418 = vsel %vm2415, %v2385, %v2258
      %v2419 = vsel %vm2415, %v2386, %v2260
      %v2420 = vsel %vm2415, %v2387, %v2262
      %v2421 = vsel %vm2415, %v2388, %v2264
      %v2422 = vsel %vm2415, %v2389, %v2266
      %v2423 = vsel %vm2415, %v2390, %v2268
      %v2424 = vsel %vm2415, %v2391, %v2270
      %v2425 = vsel %vm2415, %v2392, %v2272
      %v2426 = vsel %vm2415, %v2393, %v2274
      %v2427 = vsel %vm2415, %v2394, %v2276
      %v2428 = vsel %vm2415, %v2395, %v2278
      %v2429 = vsel %vm2415, %v2396, %v2280
      %v2430 = vsel %vm2415, %v2397, %v2282
      %v2431 = vsel %vm2415, %v2398, %v2284
      %v2432 = vsel %vm2415, %v2399, %v2286
      %v2433 = vsel %vm2415, %v2400, %v2288
      %v2434 = vsel %vm2415, %v2401, %v2290
      %v2435 = vsel %vm2415, %v2402, %v2292
      %v2436 = vsel %vm2415, %v2403, %v2294
      %v2437 = vsel %vm2415, %v2404, %v2296
      %v2438 = vsel %vm2415, %v2405, %v2298
      %v2439 = vsel %vm2415, %v2406, %v2300
      %v2440 = vsel %vm2415, %v2407, %v2302
      %v2441 = vsel %vm2415, %v2408, %v2304
      %v2442 = vsel %vm2415, %v2409, %v2306
      %v2443 = vsel %vm2415, %v2410, %v2308
      %v2444 = vsel %vm2415, %v2411, %v2310
      %v2445 = vsel %vm2415, %v2412, %v2312
      %v2446 = vsel %vm2415, %v2413, %v2314
      %v2447 = vsel %vm2415, %v2414, %v2316
      %v2448 = vmax.f32 %v2416, 0.0
      %v2449 = vmax.f32 %v2417, 0.0
      %v2450 = vmax.f32 %v2418, 0.0
      %v2451 = vmax.f32 %v2419, 0.0
      %v2452 = vmax.f32 %v2420, 0.0
      %v2453 = vmax.f32 %v2421, 0.0
      %v2454 = vmax.f32 %v2422, 0.0
      %v2455 = vmax.f32 %v2423, 0.0
      %v2456 = vmax.f32 %v2424, 0.0
      %v2457 = vmax.f32 %v2425, 0.0
      %v2458 = vmax.f32 %v2426, 0.0
      %v2459 = vmax.f32 %v2427, 0.0
      %v2460 = vmax.f32 %v2428, 0.0
      %v2461 = vmax.f32 %v2429, 0.0
      %v2462 = vmax.f32 %v2430, 0.0
      %v2463 = vmax.f32 %v2431, 0.0
      %v2464 = vmax.f32 %v2432, 0.0
      %v2465 = vmax.f32 %v2433, 0.0
      %v2466 = vmax.f32 %v2434, 0.0
      %v2467 = vmax.f32 %v2435, 0.0
      %v2468 = vmax.f32 %v2436, 0.0
      %v2469 = vmax.f32 %v2437, 0.0
      %v2470 = vmax.f32 %v2438, 0.0
      %v2471 = vmax.f32 %v2439, 0.0
      %v2472 = vmax.f32 %v2440, 0.0
      %v2473 = vmax.f32 %v2441, 0.0
      %v2474 = vmax.f32 %v2442, 0.0
      %v2475 = vmax.f32 %v2443, 0.0
      %v2476 = vmax.f32 %v2444, 0.0
      %v2477 = vmax.f32 %v2445, 0.0
      %v2478 = vmax.f32 %v2446, 0.0
      %v2479 = vmax.f32 %v2447, 0.0
      %2480 = vmatprep.subr.mxu0 %v1742
      %2481 = vmatpush1.msra.mxu0 %v1741
      %2482 = vmatprep.subr.mxu0 %v1744
      %2483 = vmatpush1.msra.mxu0 %v1743
      %2484 = vmatprep.subr.mxu0 %v1746
      %2485 = vmatpush1.msra.mxu0 %v1745
      %2486 = vmatprep.subr.mxu0 %v1748
      %2487 = vmatpush1.msra.mxu0 %v1747
      %2488 = vmatprep.subr.mxu0 %v1750
      %2489 = vmatpush1.msra.mxu0 %v1749
      %2490 = vmatprep.subr.mxu0 %v1752
      %2491 = vmatpush1.msra.mxu0 %v1751
      %2492 = vmatprep.subr.mxu0 %v1754
      %2493 = vmatpush1.msra.mxu0 %v1753
      %2494 = vmatprep.subr.mxu0 %v1756
      %2495 = vmatpush1.msra.mxu0 %v1755
      %2496 = vmatprep.subr.mxu0 %v1758
      %2497 = vmatpush1.msra.mxu0 %v1757
      %2498 = vmatprep.subr.mxu0 %v1760
      %2499 = vmatpush1.msra.mxu0 %v1759
      %2500 = vmatprep.subr.mxu0 %v1762
      %2501 = vmatpush1.msra.mxu0 %v1761
      %2502 = vmatprep.subr.mxu0 %v1764
      %2503 = vmatpush1.msra.mxu0 %v1763
      %2504 = vmatprep.subr.mxu0 %v1766
      %2505 = vmatpush1.msra.mxu0 %v1765
      %2506 = vmatprep.subr.mxu0 %v1768
      %2507 = vmatpush1.msra.mxu0 %v1767
      %2508 = vmatprep.subr.mxu0 %v1770
      %2509 = vmatpush1.msra.mxu0 %v1769
      %2510 = vmatprep.subr.mxu0 %v1772
      %2511 = vmatpush1.msra.mxu0 %v1771
      %2512 = vmatprep.subr.mxu0 0.0
      %2513 = vmatpush1.msra.mxu0 0.0
      %2514 = vmatprep.subr.mxu0 0.0
      %2515 = vmatpush1.msra.mxu0 0.0
      %2516 = vmatprep.subr.mxu0 0.0
      %2517 = vmatpush1.msra.mxu0 0.0
      %2518 = vmatprep.subr.mxu0 0.0
      %2519 = vmatpush1.msra.mxu0 0.0
      %2520 = vmatprep.subr.mxu0 0.0
      %2521 = vmatpush1.msra.mxu0 0.0
      %2522 = vmatprep.subr.mxu0 0.0
      %2523 = vmatpush1.msra.mxu0 0.0
      %2524 = vmatprep.subr.mxu0 0.0
      %2525 = vmatpush1.msra.mxu0 0.0
      %2526 = vmatprep.subr.mxu0 0.0
      %2527 = vmatpush1.msra.mxu0 0.0
      %2528 = vmatprep.subr.mxu0 0.0
      %2529 = vmatpush1.msra.mxu0 0.0
      %2530 = vmatprep.subr.mxu0 0.0
      %2531 = vmatpush1.msra.mxu0 0.0
      %2532 = vmatprep.subr.mxu0 0.0
      %2533 = vmatpush1.msra.mxu0 0.0
      %2534 = vmatprep.subr.mxu0 0.0
      %2535 = vmatpush1.msra.mxu0 0.0
      %2536 = vmatprep.subr.mxu0 0.0
      %2537 = vmatpush1.msra.mxu0 0.0
      %2538 = vmatprep.subr.mxu0 0.0
      %2539 = vmatpush1.msra.mxu0 0.0
      %2540 = vmatprep.subr.mxu0 0.0
      %2541 = vmatpush1.msra.mxu0 0.0
      %2542 = vmatprep.subr.mxu0 0.0
      %2543 = vmatpush1.msra.mxu0 0.0
      %2544 = vmatprep.mubr.f32.mxu0 0.0
      %2545 = vmatmul.mubr.f32.gmra.mrb[0].mxu0 %v2448
      %v2546 = vpop.f32.mrb[0].mxu0
      %v2547 = vadd.f32 0.0, %v2546
      %v2548 = vpop.f32.mrb[0].mxu0
      %v2549 = vadd.f32 0.0, %v2548
      %2550 = vmatprep.mubr.f32.mxu0 0.0
      %2551 = vmatmul.mubr.f32.gmra.mrb[0].mxu0 %v2449
      %v2552 = vpop.f32.mrb[0].mxu0
      %v2553 = vadd.f32 0.0, %v2552
      %v2554 = vpop.f32.mrb[0].mxu0
      %v2555 = vadd.f32 0.0, %v2554
      %2556 = vmatprep.mubr.f32.mxu0 0.0
      %2557 = vmatmul.mubr.f32.gmra.mrb[0].mxu0 %v2450
      %v2558 = vpop.f32.mrb[0].mxu0
      %v2559 = vadd.f32 0.0, %v2558
      %v2560 = vpop.f32.mrb[0].mxu0
      %v2561 = vadd.f32 0.0, %v2560
      %2562 = vmatprep.mubr.f32.mxu0 0.0
      %2563 = vmatmul.mubr.f32.gmra.mrb[0].mxu0 %v2451
      %v2564 = vpop.f32.mrb[0].mxu0
      %v2565 = vadd.f32 0.0, %v2564
      %v2566 = vpop.f32.mrb[0].mxu0
      %v2567 = vadd.f32 0.0, %v2566
      %2568 = vmatprep.mubr.f32.mxu0 0.0
      %2569 = vmatmul.mubr.f32.gmra.mrb[0].mxu0 %v2452
      %v2570 = vpop.f32.mrb[0].mxu0
      %v2571 = vadd.f32 0.0, %v2570
      %v2572 = vpop.f32.mrb[0].mxu0
      %v2573 = vadd.f32 0.0, %v2572
      %2574 = vmatprep.mubr.f32.mxu0 0.0
      %2575 = vmatmul.mubr.f32.gmra.mrb[0].mxu0 %v2453
      %v2576 = vpop.f32.mrb[0].mxu0
      %v2577 = vadd.f32 0.0, %v2576
      %v2578 = vpop.f32.mrb[0].mxu0
      %v2579 = vadd.f32 0.0, %v2578
      %2580 = vmatprep.mubr.f32.mxu0 0.0
      %2581 = vmatmul.mubr.f32.gmra.mrb[0].mxu0 %v2454
      %v2582 = vpop.f32.mrb[0].mxu0
      %v2583 = vadd.f32 0.0, %v2582
      %v2584 = vpop.f32.mrb[0].mxu0
      %v2585 = vadd.f32 0.0, %v2584
      %2586 = vmatprep.mubr.f32.mxu0 0.0
      %2587 = vmatmul.mubr.f32.gmra.mrb[0].mxu0 %v2455
      %v2588 = vpop.f32.mrb[0].mxu0
      %v2589 = vadd.f32 0.0, %v2588
      %v2590 = vpop.f32.mrb[0].mxu0
      %v2591 = vadd.f32 0.0, %v2590
      %2592 = vmatprep.mubr.f32.mxu0 0.0
      %2593 = vmatmul.mubr.f32.gmra.mrb[0].mxu0 %v2456
      %v2594 = vpop.f32.mrb[0].mxu0
      %v2595 = vadd.f32 0.0, %v2594
      %v2596 = vpop.f32.mrb[0].mxu0
      %v2597 = vadd.f32 0.0, %v2596
      %2598 = vmatprep.mubr.f32.mxu0 0.0
      %2599 = vmatmul.mubr.f32.gmra.mrb[0].mxu0 %v2457
      %v2600 = vpop.f32.mrb[0].mxu0
      %v2601 = vadd.f32 0.0, %v2600
      %v2602 = vpop.f32.mrb[0].mxu0
      %v2603 = vadd.f32 0.0, %v2602
      %2604 = vmatprep.mubr.f32.mxu0 0.0
      %2605 = vmatmul.mubr.f32.gmra.mrb[0].mxu0 %v2458
      %v2606 = vpop.f32.mrb[0].mxu0
      %v2607 = vadd.f32 0.0, %v2606
      %v2608 = vpop.f32.mrb[0].mxu0
      %v2609 = vadd.f32 0.0, %v2608
      %2610 = vmatprep.mubr.f32.mxu0 0.0
      %2611 = vmatmul.mubr.f32.gmra.mrb[0].mxu0 %v2459
      %v2612 = vpop.f32.mrb[0].mxu0
      %v2613 = vadd.f32 0.0, %v2612
      %v2614 = vpop.f32.mrb[0].mxu0
      %v2615 = vadd.f32 0.0, %v2614
      %2616 = vmatprep.mubr.f32.mxu0 0.0
      %2617 = vmatmul.mubr.f32.gmra.mrb[0].mxu0 %v2460
      %v2618 = vpop.f32.mrb[0].mxu0
      %v2619 = vadd.f32 0.0, %v2618
      %v2620 = vpop.f32.mrb[0].mxu0
      %v2621 = vadd.f32 0.0, %v2620
      %2622 = vmatprep.mubr.f32.mxu0 0.0
      %2623 = vmatmul.mubr.f32.gmra.mrb[0].mxu0 %v2461
      %v2624 = vpop.f32.mrb[0].mxu0
      %v2625 = vadd.f32 0.0, %v2624
      %v2626 = vpop.f32.mrb[0].mxu0
      %v2627 = vadd.f32 0.0, %v2626
      %2628 = vmatprep.mubr.f32.mxu0 0.0
      %2629 = vmatmul.mubr.f32.gmra.mrb[0].mxu0 %v2462
      %v2630 = vpop.f32.mrb[0].mxu0
      %v2631 = vadd.f32 0.0, %v2630
      %v2632 = vpop.f32.mrb[0].mxu0
      %v2633 = vadd.f32 0.0, %v2632
      %2634 = vmatprep.mubr.f32.mxu0 0.0
      %2635 = vmatmul.mubr.f32.gmra.mrb[0].mxu0 %v2463
      %v2636 = vpop.f32.mrb[0].mxu0
      %v2637 = vadd.f32 0.0, %v2636
      %v2638 = vpop.f32.mrb[0].mxu0
      %v2639 = vadd.f32 0.0, %v2638
      %2640 = vmatprep.mubr.f32.mxu0 0.0
      %2641 = vmatmul.mubr.f32.gmra.mrb[0].mxu0 %v2464
      %v2642 = vpop.f32.mrb[0].mxu0
      %v2643 = vadd.f32 0.0, %v2642
      %v2644 = vpop.f32.mrb[0].mxu0
      %v2645 = vadd.f32 0.0, %v2644
      %2646 = vmatprep.mubr.f32.mxu0 0.0
      %2647 = vmatmul.mubr.f32.gmra.mrb[0].mxu0 %v2465
      %v2648 = vpop.f32.mrb[0].mxu0
      %v2649 = vadd.f32 0.0, %v2648
      %v2650 = vpop.f32.mrb[0].mxu0
      %v2651 = vadd.f32 0.0, %v2650
      %2652 = vmatprep.mubr.f32.mxu0 0.0
      %2653 = vmatmul.mubr.f32.gmra.mrb[0].mxu0 %v2466
      %v2654 = vpop.f32.mrb[0].mxu0
      %v2655 = vadd.f32 0.0, %v2654
      %v2656 = vpop.f32.mrb[0].mxu0
      %v2657 = vadd.f32 0.0, %v2656
      %2658 = vmatprep.mubr.f32.mxu0 0.0
      %2659 = vmatmul.mubr.f32.gmra.mrb[0].mxu0 %v2467
      %v2660 = vpop.f32.mrb[0].mxu0
      %v2661 = vadd.f32 0.0, %v2660
      %v2662 = vpop.f32.mrb[0].mxu0
      %v2663 = vadd.f32 0.0, %v2662
      %2664 = vmatprep.mubr.f32.mxu0 0.0
      %2665 = vmatmul.mubr.f32.gmra.mrb[0].mxu0 %v2468
      %v2666 = vpop.f32.mrb[0].mxu0
      %v2667 = vadd.f32 0.0, %v2666
      %v2668 = vpop.f32.mrb[0].mxu0
      %v2669 = vadd.f32 0.0, %v2668
      %2670 = vmatprep.mubr.f32.mxu0 0.0
      %2671 = vmatmul.mubr.f32.gmra.mrb[0].mxu0 %v2469
      %v2672 = vpop.f32.mrb[0].mxu0
      %v2673 = vadd.f32 0.0, %v2672
      %v2674 = vpop.f32.mrb[0].mxu0
      %v2675 = vadd.f32 0.0, %v2674
      %2676 = vmatprep.mubr.f32.mxu0 0.0
      %2677 = vmatmul.mubr.f32.gmra.mrb[0].mxu0 %v2470
      %v2678 = vpop.f32.mrb[0].mxu0
      %v2679 = vadd.f32 0.0, %v2678
      %v2680 = vpop.f32.mrb[0].mxu0
      %v2681 = vadd.f32 0.0, %v2680
      %2682 = vmatprep.mubr.f32.mxu0 0.0
      %2683 = vmatmul.mubr.f32.gmra.mrb[0].mxu0 %v2471
      %v2684 = vpop.f32.mrb[0].mxu0
      %v2685 = vadd.f32 0.0, %v2684
      %v2686 = vpop.f32.mrb[0].mxu0
      %v2687 = vadd.f32 0.0, %v2686
      %2688 = vmatprep.mubr.f32.mxu0 0.0
      %2689 = vmatmul.mubr.f32.gmra.mrb[0].mxu0 %v2472
      %v2690 = vpop.f32.mrb[0].mxu0
      %v2691 = vadd.f32 0.0, %v2690
      %v2692 = vpop.f32.mrb[0].mxu0
      %v2693 = vadd.f32 0.0, %v2692
      %2694 = vmatprep.mubr.f32.mxu0 0.0
      %2695 = vmatmul.mubr.f32.gmra.mrb[0].mxu0 %v2473
      %v2696 = vpop.f32.mrb[0].mxu0
      %v2697 = vadd.f32 0.0, %v2696
      %v2698 = vpop.f32.mrb[0].mxu0
      %v2699 = vadd.f32 0.0, %v2698
      %2700 = vmatprep.mubr.f32.mxu0 0.0
      %2701 = vmatmul.mubr.f32.gmra.mrb[0].mxu0 %v2474
      %v2702 = vpop.f32.mrb[0].mxu0
      %v2703 = vadd.f32 0.0, %v2702
      %v2704 = vpop.f32.mrb[0].mxu0
      %v2705 = vadd.f32 0.0, %v2704
      %2706 = vmatprep.mubr.f32.mxu0 0.0
      %2707 = vmatmul.mubr.f32.gmra.mrb[0].mxu0 %v2475
      %v2708 = vpop.f32.mrb[0].mxu0
      %v2709 = vadd.f32 0.0, %v2708
      %v2710 = vpop.f32.mrb[0].mxu0
      %v2711 = vadd.f32 0.0, %v2710
      %2712 = vmatprep.mubr.f32.mxu0 0.0
      %2713 = vmatmul.mubr.f32.gmra.mrb[0].mxu0 %v2476
      %v2714 = vpop.f32.mrb[0].mxu0
      %v2715 = vadd.f32 0.0, %v2714
      %v2716 = vpop.f32.mrb[0].mxu0
      %v2717 = vadd.f32 0.0, %v2716
      %2718 = vmatprep.mubr.f32.mxu0 0.0
      %2719 = vmatmul.mubr.f32.gmra.mrb[0].mxu0 %v2477
      %v2720 = vpop.f32.mrb[0].mxu0
      %v2721 = vadd.f32 0.0, %v2720
      %v2722 = vpop.f32.mrb[0].mxu0
      %v2723 = vadd.f32 0.0, %v2722
      %2724 = vmatprep.mubr.f32.mxu0 0.0
      %2725 = vmatmul.mubr.f32.gmra.mrb[0].mxu0 %v2478
      %v2726 = vpop.f32.mrb[0].mxu0
      %v2727 = vadd.f32 0.0, %v2726
      %v2728 = vpop.f32.mrb[0].mxu0
      %v2729 = vadd.f32 0.0, %v2728
      %2730 = vmatprep.mubr.f32.mxu0 0.0
      %2731 = vmatmul.mubr.f32.gmra.mrb[0].mxu0 %v2479
      %v2732 = vpop.f32.mrb[0].mxu0
      %v2733 = vadd.f32 0.0, %v2732
      %v2734 = vpop.f32.mrb[0].mxu0
      %v2735 = vadd.f32 0.0, %v2734
      %2736 = vdwg.mxu0
      %2737 = vst [vmem:[%s339] sm:$0xff] %v2547
      %2738 = vst [vmem:[%s339 + $0x8] sm:$0xff] %v2553
      %2739 = vst [vmem:[%s339 + $0x20] sm:$0xff] %v2559
      %2740 = vst [vmem:[%s339 + $0x28] sm:$0xff] %v2565
      %2741 = vst [vmem:[%s339 + $0x40] sm:$0xff] %v2571
      %2742 = vst [vmem:[%s339 + $0x48] sm:$0xff] %v2577
      %2743 = vst [vmem:[%s339 + $0x60] sm:$0xff] %v2583
      %2744 = vst [vmem:[%s339 + $0x68] sm:$0xff] %v2589
      %2745 = vst [vmem:[%s339 + $0x80] sm:$0xff] %v2595
      %2746 = vst [vmem:[%s339 + $0x88] sm:$0xff] %v2601
      %2747 = vst [vmem:[%s339 + $0xa0] sm:$0xff] %v2607
      %2748 = vst [vmem:[%s339 + $0xa8] sm:$0xff] %v2613
      %2749 = vst [vmem:[%s339 + $0xc0] sm:$0xff] %v2619
      %2750 = vst [vmem:[%s339 + $0xc8] sm:$0xff] %v2625
      %2751 = vst [vmem:[%s339 + $0xe0] sm:$0xff] %v2631
      %2752 = vst [vmem:[%s339 + $0xe8] sm:$0xff] %v2637
      %2753 = vst [vmem:[%s339 + $0x100] sm:$0xff] %v2643
      %2754 = vst [vmem:[%s339 + $0x108] sm:$0xff] %v2649
      %2755 = vst [vmem:[%s339 + $0x120] sm:$0xff] %v2655
      %2756 = vst [vmem:[%s339 + $0x128] sm:$0xff] %v2661
      %2757 = vst [vmem:[%s339 + $0x140] sm:$0xff] %v2667
      %2758 = vst [vmem:[%s339 + $0x148] sm:$0xff] %v2673
      %2759 = vst [vmem:[%s339 + $0x160] sm:$0xff] %v2679
      %2760 = vst [vmem:[%s339 + $0x168] sm:$0xff] %v2685
      %2761 = vst [vmem:[%s339 + $0x180] sm:$0xff] %v2691
      %2762 = vst [vmem:[%s339 + $0x188] sm:$0xff] %v2697
      %2763 = vst [vmem:[%s339 + $0x1a0] sm:$0xff] %v2703
      %2764 = vst [vmem:[%s339 + $0x1a8] sm:$0xff] %v2709
      %2765 = vst [vmem:[%s339 + $0x1c0] sm:$0xff] %v2715
      %2766 = vst [vmem:[%s339 + $0x1c8] sm:$0xff] %v2721
      %2767 = vst [vmem:[%s339 + $0x1e0] sm:$0xff] %v2727
      %2768 = vst [vmem:[%s339 + $0x1e8] sm:$0xff] %v2733
      %s2769 = scalar_lea.vmem %s339, 16
      %2770 = vst [vmem:[%s2769] sm:$0xff] %v2549
      %2771 = vst [vmem:[%s2769 + $0x8] sm:$0xff] %v2555
      %2772 = vst [vmem:[%s2769 + $0x20] sm:$0xff] %v2561
      %2773 = vst [vmem:[%s2769 + $0x28] sm:$0xff] %v2567
      %2774 = vst [vmem:[%s2769 + $0x40] sm:$0xff] %v2573
      %2775 = vst [vmem:[%s2769 + $0x48] sm:$0xff] %v2579
      %2776 = vst [vmem:[%s2769 + $0x60] sm:$0xff] %v2585
      %2777 = vst [vmem:[%s2769 + $0x68] sm:$0xff] %v2591
      %2778 = vst [vmem:[%s2769 + $0x80] sm:$0xff] %v2597
      %2779 = vst [vmem:[%s2769 + $0x88] sm:$0xff] %v2603
      %2780 = vst [vmem:[%s2769 + $0xa0] sm:$0xff] %v2609
      %2781 = vst [vmem:[%s2769 + $0xa8] sm:$0xff] %v2615
      %2782 = vst [vmem:[%s2769 + $0xc0] sm:$0xff] %v2621
      %2783 = vst [vmem:[%s2769 + $0xc8] sm:$0xff] %v2627
      %2784 = vst [vmem:[%s2769 + $0xe0] sm:$0xff] %v2633
      %2785 = vst [vmem:[%s2769 + $0xe8] sm:$0xff] %v2639
      %2786 = vst [vmem:[%s2769 + $0x100] sm:$0xff] %v2645
      %2787 = vst [vmem:[%s2769 + $0x108] sm:$0xff] %v2651
      %2788 = vst [vmem:[%s2769 + $0x120] sm:$0xff] %v2657
      %2789 = vst [vmem:[%s2769 + $0x128] sm:$0xff] %v2663
      %2790 = vst [vmem:[%s2769 + $0x140] sm:$0xff] %v2669
      %2791 = vst [vmem:[%s2769 + $0x148] sm:$0xff] %v2675
      %2792 = vst [vmem:[%s2769 + $0x160] sm:$0xff] %v2681
      %2793 = vst [vmem:[%s2769 + $0x168] sm:$0xff] %v2687
      %2794 = vst [vmem:[%s2769 + $0x180] sm:$0xff] %v2693
      %2795 = vst [vmem:[%s2769 + $0x188] sm:$0xff] %v2699
      %2796 = vst [vmem:[%s2769 + $0x1a0] sm:$0xff] %v2705
      %2797 = vst [vmem:[%s2769 + $0x1a8] sm:$0xff] %v2711
      %2798 = vst [vmem:[%s2769 + $0x1c0] sm:$0xff] %v2717
      %2799 = vst [vmem:[%s2769 + $0x1c8] sm:$0xff] %v2723
      %2800 = vst [vmem:[%s2769 + $0x1e0] sm:$0xff] %v2729
      %2801 = vst [vmem:[%s2769 + $0x1e8] sm:$0xff] %v2735
      %s2802 = sadd.s32 %s20, %s21
      %s2803 = smul.u32 16, %s2802
      %p2804 = scmp.lt.s32.totalorder %s2803, 31
      %s2805 = scalar_select %p2804, %s2803, 31
      %s2806 = smul.addr %s2805, 4
      %s2807 = smul.addr %s2806, 8
      %s2808 = scalar_lea.vmem %s5, %s2807
      // Predicated region
      $region41: #{upsample_transition.1} parent=39 // pred_check
        %p2809 = pneg %p171
      $region42: #{upsample_transition.1} parent=39 // pred_check_branch
        %2811 = sbr.rel (%p2809) target = $region44
      $region43: #{upsample_transition.1} parent=39 // pred_region
        %s2812 = sadd.s32 %s20, %s21
        %s2813 = smul.u32 16, %s2812
      $region44: #{upsample_transition.1} parent=39 // pred_fallthru
        _
    $region40: #{upsample_transition.1} parent=5 // pred_fallthru
      _
    %p2814 = scmp.le.s32.totalorder 2, %s11
    // Predicated region
    $region45: #{upsample_transition.1} parent=5 // pred_check
      %p2815 = pneg %p2814
    $region46: #{upsample_transition.1} parent=5 // pred_check_branch
      %2817 = sbr.rel (%p2815) target = $region48
    $region47: #{upsample_transition.1} parent=5 // pred_region
      %s2818 = ssub.s32 %s11, 2
      // Predicated region
      $region49: #{upsample_transition.1} parent=47 // pred_check
        %p2819 = pneg %p177
      $region50: #{upsample_transition.1} parent=47 // pred_check_branch
        %2821 = sbr.rel (%p2819) target = $region52
      $region51: #{upsample_transition.1} parent=47 // pred_region
        %s2822 = sadd.s32 %s22, %s23
        %s2823 = smul.u32 16, %s2822
        %p2824 = scmp.lt.s32.totalorder %s2823, 31
        %s2825 = scalar_select %p2824, %s2823, 31
        %s2826 = smul.addr %s2825, 4
        %s2827 = smul.addr %s2826, 8
        %s2828 = scalar_lea.vmem %s5, %s2827
      $region52: #{upsample_transition.1} parent=47 // pred_fallthru
        _
    $region48: #{upsample_transition.1} parent=5 // pred_fallthru
      _
  $region6: #{upsample_transition.1} parent=0 // loop_footer
    %s15 = sadd.s32 1, %s11
  $region7: #{upsample_transition.1} parent=0 // loop_footer_branch
    %10 = sbr.rel target = $region3
  $region8: #{upsample_transition.1} parent=0 // loop_exit
    _

</llo_original>
